<compile_context>
chip_gen: v7x
topology: tpu7x:2x2x1
jax: 0.10.0
libtpu: 0.0.40
codegen_flags: <defaults>
</compile_context>

<pallas_src>
import functools

import jax
import jax.numpy as jnp
from jax.experimental import pallas as pl
from jax.experimental.pallas import tpu as pltpu

_LN_EPS = 1e-5  # torch.nn.LayerNorm default


# ---------------------------------------------------------------------------
# In-kernel helpers (pure functions traced inside the kernels)
# ---------------------------------------------------------------------------
def _layernorm(s, g, b, eps=_LN_EPS):
    mu = jnp.mean(s, axis=-1, keepdims=True)
    var = jnp.mean(jnp.square(s - mu), axis=-1, keepdims=True)
    return (s - mu) * jax.lax.rsqrt(var + eps) * g + b


def _mha_row(value, wq, bq, wo, bo):
    """Degenerate-einsum MHA: fc_o(sum_v fc_q(value)); one row, identical for
    every query position (broadcast by the caller via the residual add)."""
    v = jnp.dot(value, wq, preferred_element_type=jnp.float32) + bq      # (Lv, D)
    vsum = jnp.sum(v, axis=0, keepdims=True)                             # (1, D)
    return jnp.dot(vsum, wo, preferred_element_type=jnp.float32) + bo    # (1, D)


# ---------------------------------------------------------------------------
# Fused Pallas kernels
# ---------------------------------------------------------------------------
def _encoder_block_kernel(x_ref,
                          wq_ref, bq_ref, wo_ref, bo_ref,
                          g1_ref, bn1_ref,
                          w1_ref, bf1_ref, w2_ref, bf2_ref,
                          g2_ref, bn2_ref,
                          o_ref):
    x = x_ref[0]                                                         # (L, D)
    sa = _mha_row(x, wq_ref[...], bq_ref[...], wo_ref[...], bo_ref[...])
    h1 = _layernorm(x + sa, g1_ref[...], bn1_ref[...])
    h = jnp.maximum(
        jnp.dot(h1, w1_ref[...], preferred_element_type=jnp.float32) + bf1_ref[...],
        0.0)
    ff = jnp.dot(h, w2_ref[...], preferred_element_type=jnp.float32) + bf2_ref[...]
    o_ref[0] = _layernorm(h1 + ff, g2_ref[...], bn2_ref[...])


def _decoder_block_kernel(t_ref, e_ref,
                          wqm_ref, bqm_ref, wom_ref, bom_ref, g1_ref, bn1_ref,
                          wqc_ref, bqc_ref, woc_ref, boc_ref, g2_ref, bn2_ref,
                          w1_ref, bf1_ref, w2_ref, bf2_ref, g3_ref, bn3_ref,
                          o_ref):
    t = t_ref[0]                                                         # (Lt, D)
    e = e_ref[0]                                                         # (Ls, D)
    # Masked self-attention (trg_mask has no effect on the output — see header)
    msa = _mha_row(t, wqm_ref[...], bqm_ref[...], wom_ref[...], bom_ref[...])
    x1 = _layernorm(t + msa, g1_ref[...], bn1_ref[...])
    # Cross-attention: value == encoded_src
    ca = _mha_row(e, wqc_ref[...], bqc_ref[...], woc_ref[...], boc_ref[...])
    x2 = _layernorm(x1 + ca, g2_ref[...], bn2_ref[...])
    # FFN
    h = jnp.maximum(
        jnp.dot(x2, w1_ref[...], preferred_element_type=jnp.float32) + bf1_ref[...],
        0.0)
    ff = jnp.dot(h, w2_ref[...], preferred_element_type=jnp.float32) + bf2_ref[...]
    o_ref[0] = _layernorm(x2 + ff, g3_ref[...], bn3_ref[...])


def _vocab_proj_kernel(x_ref, w_ref, b_ref, o_ref):
    o_ref[...] = (jnp.dot(x_ref[...], w_ref[...],
                          preferred_element_type=jnp.float32) + b_ref[...])


# ---------------------------------------------------------------------------
# pallas_call wrappers
# ---------------------------------------------------------------------------
def _row(v):
    return v.reshape(1, -1)


def _const_spec(shape):
    nd = len(shape)
    return pl.BlockSpec(shape, lambda n: (0,) * nd)


def encoder_block(p, src):
    N, L, D = src.shape
    F = p["ffn"]["fc1"]["w"].shape[1]
    return pl.pallas_call(
        _encoder_block_kernel,
        out_shape=jax.ShapeDtypeStruct((N, L, D), jnp.float32),
        grid=(N,),
        in_specs=[
            pl.BlockSpec((1, L, D), lambda n: (n, 0, 0)),
            _const_spec((D, D)), _const_spec((1, D)),      # fc_q
            _const_spec((D, D)), _const_spec((1, D)),      # fc_o
            _const_spec((1, D)), _const_spec((1, D)),      # norm1
            _const_spec((D, F)), _const_spec((1, F)),      # ffn fc1
            _const_spec((F, D)), _const_spec((1, D)),      # ffn fc2
            _const_spec((1, D)), _const_spec((1, D)),      # norm2
        ],
        out_specs=pl.BlockSpec((1, L, D), lambda n: (n, 0, 0)),
        compiler_params=pltpu.CompilerParams(
            dimension_semantics=("parallel",)),
    )(src,
      p["self_attn"]["fc_q"]["w"], _row(p["self_attn"]["fc_q"]["b"]),
      p["self_attn"]["fc_o"]["w"], _row(p["self_attn"]["fc_o"]["b"]),
      _row(p["norm1"]["g"]), _row(p["norm1"]["b"]),
      p["ffn"]["fc1"]["w"], _row(p["ffn"]["fc1"]["b"]),
      p["ffn"]["fc2"]["w"], _row(p["ffn"]["fc2"]["b"]),
      _row(p["norm2"]["g"]), _row(p["norm2"]["b"]))


def decoder_block(p, trg, enc_src):
    N, Lt, D = trg.shape
    Ls = enc_src.shape[1]
    F = p["ffn"]["fc1"]["w"].shape[1]
    return pl.pallas_call(
        _decoder_block_kernel,
        out_shape=jax.ShapeDtypeStruct((N, Lt, D), jnp.float32),
        grid=(N,),
        in_specs=[
            pl.BlockSpec((1, Lt, D), lambda n: (n, 0, 0)),
            pl.BlockSpec((1, Ls, D), lambda n: (n, 0, 0)),
            _const_spec((D, D)), _const_spec((1, D)),      # masked self-attn fc_q
            _const_spec((D, D)), _const_spec((1, D)),      # masked self-attn fc_o
            _const_spec((1, D)), _const_spec((1, D)),      # norm1
            _const_spec((D, D)), _const_spec((1, D)),      # cross-attn fc_q
            _const_spec((D, D)), _const_spec((1, D)),      # cross-attn fc_o
            _const_spec((1, D)), _const_spec((1, D)),      # norm2
            _const_spec((D, F)), _const_spec((1, F)),      # ffn fc1
            _const_spec((F, D)), _const_spec((1, D)),      # ffn fc2
            _const_spec((1, D)), _const_spec((1, D)),      # norm3
        ],
        out_specs=pl.BlockSpec((1, Lt, D), lambda n: (n, 0, 0)),
        compiler_params=pltpu.CompilerParams(
            dimension_semantics=("parallel",)),
    )(trg, enc_src,
      p["masked_self_attn"]["fc_q"]["w"], _row(p["masked_self_attn"]["fc_q"]["b"]),
      p["masked_self_attn"]["fc_o"]["w"], _row(p["masked_self_attn"]["fc_o"]["b"]),
      _row(p["norm1"]["g"]), _row(p["norm1"]["b"]),
      p["cross_attn"]["fc_q"]["w"], _row(p["cross_attn"]["fc_q"]["b"]),
      p["cross_attn"]["fc_o"]["w"], _row(p["cross_attn"]["fc_o"]["b"]),
      _row(p["norm2"]["g"]), _row(p["norm2"]["b"]),
      p["ffn"]["fc1"]["w"], _row(p["ffn"]["fc1"]["b"]),
      p["ffn"]["fc2"]["w"], _row(p["ffn"]["fc2"]["b"]),
      _row(p["norm3"]["g"]), _row(p["norm3"]["b"]))


def vocab_projection(x2d, w, b):
    """Final fc_out with lane-dense (128-padded) output stores."""
    M, D = x2d.shape
    V = w.shape[1]
    pad = (-V) % 128
    Vp = V + pad
    w_p = jnp.pad(w, ((0, 0), (0, pad)))
    b_p = jnp.pad(b, ((0, pad),)).reshape(1, Vp)
    out = pl.pallas_call(
        _vocab_proj_kernel,
        out_shape=jax.ShapeDtypeStruct((M, Vp), jnp.float32),
        grid=(1,),
        in_specs=[
            pl.BlockSpec((M, D), lambda i: (0, 0)),
            pl.BlockSpec((D, Vp), lambda i: (0, 0)),
            pl.BlockSpec((1, Vp), lambda i: (0, 0)),
        ],
        out_specs=pl.BlockSpec((M, Vp), lambda i: (0, 0)),
    )(x2d, w_p, b_p)
    return out[:, :V]


# ---------------------------------------------------------------------------
# Model glue (plain JAX: embedding gathers, reshapes)
# ---------------------------------------------------------------------------
def make_src_mask(src, src_pad_idx):
    """Reference mask builder — kept for documentation; output-irrelevant."""
    return (src != src_pad_idx)[:, None, None, :]


def make_trg_mask(trg, src_pad_idx):
    """Reference mask builder (uses src_pad_idx, as in the reference);
    output-irrelevant under the degenerate output einsum."""
    N, L = trg.shape
    pad = (trg != src_pad_idx)[:, None, None, :]
    sub = jnp.tril(jnp.ones((L, L), dtype=jnp.bool_))
    return pad & sub


def encoder_forward(p, src_tokens):
    N, L = src_tokens.shape
    pos = jnp.arange(L, dtype=jnp.int32)[None, :]
    x = jnp.take(p["token_emb"], src_tokens, axis=0) + jnp.take(p["pos_emb"], pos, axis=0)
    for blk in p["blocks"]:
        x = encoder_block(blk, x)
    return x


def decoder_forward(p, trg_tokens, enc_src):
    N, L = trg_tokens.shape
    D = p["token_emb"].shape[1]
    pos = jnp.arange(L, dtype=jnp.int32)[None, :]
    x = jnp.take(p["token_emb"], trg_tokens, axis=0) + jnp.take(p["pos_emb"], pos, axis=0)
    for blk in p["blocks"]:
        x = decoder_block(blk, x, enc_src)
    V = p["fc_out"]["w"].shape[1]
    out = vocab_projection(x.reshape(-1, D), p["fc_out"]["w"], p["fc_out"]["b"])
    return out.reshape(N, L, V)


def transformer_forward(params, src, trg):
    # src_mask / trg_mask are provably output-irrelevant (attention rows sum
    # to 1 and the reference einsum contracts them away), so they are not
    # materialized or shipped to the kernels.
    enc = encoder_forward(params["encoder"], src)
    return decoder_forward(params["decoder"], trg, enc)


# ---------------------------------------------------------------------------
# Deterministic parameter init (mirrors the PyTorch module's parameter set)
# ---------------------------------------------------------------------------
def _init_linear(key, d_in, d_out):
    kw, kb = jax.random.split(key)
    return {"w": 0.02 * jax.random.normal(kw, (d_in, d_out), jnp.float32),
            "b": 0.02 * jax.random.normal(kb, (d_out,), jnp.float32)}


def _init_ln(d):
    return {"g": jnp.ones((d,), jnp.float32), "b": jnp.zeros((d,), jnp.float32)}


def _init_mha(key, d):
    ks = jax.random.split(key, 4)
    return {"fc_q": _init_linear(ks[0], d, d),
            "fc_k": _init_linear(ks[1], d, d),   # unused in forward (faithful to ref)
            "fc_v": _init_linear(ks[2], d, d),   # unused in forward (faithful to ref)
            "fc_o": _init_linear(ks[3], d, d)}


def _init_ffn(key, d, d_ff):
    k1, k2 = jax.random.split(key)
    return {"fc1": _init_linear(k1, d, d_ff), "fc2": _init_linear(k2, d_ff, d)}


def _init_encoder_block(key, d, d_ff):
    k1, k2 = jax.random.split(key)
    return {"self_attn": _init_mha(k1, d), "norm1": _init_ln(d),
            "ffn": _init_ffn(k2, d, d_ff), "norm2": _init_ln(d)}


def _init_decoder_block(key, d, d_ff):
    k1, k2, k3 = jax.random.split(key, 3)
    return {"masked_self_attn": _init_mha(k1, d), "norm1": _init_ln(d),
            "cross_attn": _init_mha(k2, d), "norm2": _init_ln(d),
            "ffn": _init_ffn(k3, d, d_ff), "norm3": _init_ln(d)}


def init_params(key, cfg):
    d, d_ff, n_blocks = cfg["d_emb"], cfg["d_ff"], cfg["n_blocks"]
    keys = jax.random.split(key, 8 + 2 * n_blocks)
    enc = {
        "token_emb": 0.02 * jax.random.normal(keys[0], (cfg["src_vocab_size"], d), jnp.float32),
        "pos_emb": 0.02 * jax.random.normal(keys[1], (cfg["max_length"], d), jnp.float32),
        "blocks": [_init_encoder_block(keys[4 + i], d, d_ff) for i in range(n_blocks)],
    }
    dec = {
        "token_emb": 0.02 * jax.random.normal(keys[2], (cfg["trg_vocab_size"], d), jnp.float32),
        "pos_emb": 0.02 * jax.random.normal(keys[3], (cfg["max_length"], d), jnp.float32),
        "blocks": [_init_decoder_block(keys[4 + n_blocks + i], d, d_ff) for i in range(n_blocks)],
        "fc_out": _init_linear(keys[4 + 2 * n_blocks], d, cfg["trg_vocab_size"]),
    }
    return {"encoder": enc, "decoder": dec}


# ---------------------------------------------------------------------------
if __name__ == "__main__":
    cfg = dict(src_vocab_size=50, trg_vocab_size=50,
               src_pad_idx=0, trg_pad_idx=0,
               d_emb=32, heads=4, d_ff=64, n_blocks=2,
               dropout=0.1, max_length=16)
    assert cfg["d_emb"] % cfg["heads"] == 0

    root = jax.random.PRNGKey(0)
    kp, ks, kt = jax.random.split(root, 3)
    params = init_params(kp, cfg)

    N, src_len, trg_len = 2, 8, 8
    # tokens in [1, vocab) so no pad tokens -> no fully-masked rows
    src = jax.random.randint(ks, (N, src_len), 1, cfg["src_vocab_size"], dtype=jnp.int32)
    trg = jax.random.randint(kt, (N, trg_len), 1, cfg["trg_vocab_size"], dtype=jnp.int32)

    fwd = jax.jit(transformer_forward)
    out = jax.block_until_ready(fwd(params, src, trg))

    assert out.shape == (N, trg_len, cfg["trg_vocab_size"]), out.shape
    assert bool(jnp.all(jnp.isfinite(out)))
    print("KERNEL_OK")
</pallas_src>

<mosaic_0001>
module attributes {stable_mosaic.version = 11 : i64} {
  func.func @_encoder_block_kernel(%arg0: i32, %arg1: memref<1x8x32xf32, #tpu.memory_space<vmem>>, %arg2: memref<32x32xf32, #tpu.memory_space<vmem>>, %arg3: memref<1x32xf32, #tpu.memory_space<vmem>>, %arg4: memref<32x32xf32, #tpu.memory_space<vmem>>, %arg5: memref<1x32xf32, #tpu.memory_space<vmem>>, %arg6: memref<1x32xf32, #tpu.memory_space<vmem>>, %arg7: memref<1x32xf32, #tpu.memory_space<vmem>>, %arg8: memref<32x64xf32, #tpu.memory_space<vmem>>, %arg9: memref<1x64xf32, #tpu.memory_space<vmem>>, %arg10: memref<64x32xf32, #tpu.memory_space<vmem>>, %arg11: memref<1x32xf32, #tpu.memory_space<vmem>>, %arg12: memref<1x32xf32, #tpu.memory_space<vmem>>, %arg13: memref<1x32xf32, #tpu.memory_space<vmem>>, %arg14: memref<1x8x32xf32, #tpu.memory_space<vmem>>) attributes {dimension_semantics = [#tpu.dimension_semantics<parallel>], iteration_bounds = array<i64: 2>, scalar_prefetch = 0 : i64, scratch_operands = 0 : i64, tpu.core_type = #tpu.core_type<tc>, window_params = [{transform_indices = @transform_0, window_bounds = array<i64: 1, 8, 32>}, {pipeline_mode = #tpu.pipeline_mode<synchronous>, transform_indices = @transform_1, window_bounds = array<i64: 32, 32>}, {pipeline_mode = #tpu.pipeline_mode<synchronous>, transform_indices = @transform_2, window_bounds = array<i64: 1, 32>}, {pipeline_mode = #tpu.pipeline_mode<synchronous>, transform_indices = @transform_3, window_bounds = array<i64: 32, 32>}, {pipeline_mode = #tpu.pipeline_mode<synchronous>, transform_indices = @transform_4, window_bounds = array<i64: 1, 32>}, {pipeline_mode = #tpu.pipeline_mode<synchronous>, transform_indices = @transform_5, window_bounds = array<i64: 1, 32>}, {pipeline_mode = #tpu.pipeline_mode<synchronous>, transform_indices = @transform_6, window_bounds = array<i64: 1, 32>}, {pipeline_mode = #tpu.pipeline_mode<synchronous>, transform_indices = @transform_7, window_bounds = array<i64: 32, 64>}, {pipeline_mode = #tpu.pipeline_mode<synchronous>, transform_indices = @transform_8, window_bounds = array<i64: 1, 64>}, {pipeline_mode = #tpu.pipeline_mode<synchronous>, transform_indices = @transform_9, window_bounds = array<i64: 64, 32>}, {pipeline_mode = #tpu.pipeline_mode<synchronous>, transform_indices = @transform_10, window_bounds = array<i64: 1, 32>}, {pipeline_mode = #tpu.pipeline_mode<synchronous>, transform_indices = @transform_11, window_bounds = array<i64: 1, 32>}, {pipeline_mode = #tpu.pipeline_mode<synchronous>, transform_indices = @transform_12, window_bounds = array<i64: 1, 32>}, {transform_indices = @transform_13, window_bounds = array<i64: 1, 8, 32>}]} {
    %c0 = arith.constant 0 : index
    %c0_0 = arith.constant 0 : index
    %c0_1 = arith.constant 0 : index
    %0 = vector.load %arg1[%c0, %c0_0, %c0_1] : memref<1x8x32xf32, #tpu.memory_space<vmem>>, vector<1x8x32xf32>
    %1 = vector.shape_cast %0 : vector<1x8x32xf32> to vector<8x32xf32>
    %c0_2 = arith.constant 0 : index
    %c0_3 = arith.constant 0 : index
    %2 = vector.load %arg2[%c0_2, %c0_3] : memref<32x32xf32, #tpu.memory_space<vmem>>, vector<32x32xf32>
    %c0_4 = arith.constant 0 : index
    %c0_5 = arith.constant 0 : index
    %3 = vector.load %arg3[%c0_4, %c0_5] : memref<1x32xf32, #tpu.memory_space<vmem>>, vector<1x32xf32>
    %c0_6 = arith.constant 0 : index
    %c0_7 = arith.constant 0 : index
    %4 = vector.load %arg4[%c0_6, %c0_7] : memref<32x32xf32, #tpu.memory_space<vmem>>, vector<32x32xf32>
    %c0_8 = arith.constant 0 : index
    %c0_9 = arith.constant 0 : index
    %5 = vector.load %arg5[%c0_8, %c0_9] : memref<1x32xf32, #tpu.memory_space<vmem>>, vector<1x32xf32>
    %cst = arith.constant dense<0.000000e+00> : vector<8x32xf32>
    %6 = tpu.matmul %1, %2, %cst {dimension_numbers = #tpu.dot_dimension_numbers<[1], [0], [0], [1], [0, 0, 1, 1], [], []>} : vector<8x32xf32>, vector<32x32xf32>, vector<8x32xf32> -> vector<8x32xf32>
    %7 = vector.broadcast %3 : vector<1x32xf32> to vector<8x32xf32>
    %8 = arith.addf %6, %7 : vector<8x32xf32>
    %cst_10 = arith.constant dense<0.000000e+00> : vector<32xf32>
    %9 = vector.multi_reduction <add>, %8, %cst_10 [0] : vector<8x32xf32> to vector<32xf32>
    %10 = vector.shape_cast %9 : vector<32xf32> to vector<1x32xf32>
    %cst_11 = arith.constant dense<0.000000e+00> : vector<1x32xf32>
    %11 = tpu.matmul %10, %4, %cst_11 {dimension_numbers = #tpu.dot_dimension_numbers<[1], [0], [0], [1], [0, 0, 1, 1], [], []>} : vector<1x32xf32>, vector<32x32xf32>, vector<1x32xf32> -> vector<1x32xf32>
    %12 = arith.addf %11, %5 : vector<1x32xf32>
    %13 = vector.broadcast %12 : vector<1x32xf32> to vector<8x32xf32>
    %14 = arith.addf %1, %13 : vector<8x32xf32>
    %c0_12 = arith.constant 0 : index
    %c0_13 = arith.constant 0 : index
    %15 = vector.load %arg6[%c0_12, %c0_13] : memref<1x32xf32, #tpu.memory_space<vmem>>, vector<1x32xf32>
    %c0_14 = arith.constant 0 : index
    %c0_15 = arith.constant 0 : index
    %16 = vector.load %arg7[%c0_14, %c0_15] : memref<1x32xf32, #tpu.memory_space<vmem>>, vector<1x32xf32>
    %cst_16 = arith.constant dense<0.000000e+00> : vector<8xf32>
    %17 = vector.multi_reduction <add>, %14, %cst_16 [1] : vector<8x32xf32> to vector<8xf32>
    %18 = vector.shape_cast %17 : vector<8xf32> to vector<8x1xf32>
    %cst_17 = arith.constant 3.200000e+01 : f32
    %19 = vector.broadcast %cst_17 : f32 to vector<8x1xf32>
    %20 = arith.divf %18, %19 : vector<8x1xf32>
    %21 = vector.broadcast %20 : vector<8x1xf32> to vector<8x32xf32>
    %22 = arith.subf %14, %21 : vector<8x32xf32>
    %23 = arith.mulf %22, %22 : vector<8x32xf32>
    %cst_18 = arith.constant dense<0.000000e+00> : vector<8xf32>
    %24 = vector.multi_reduction <add>, %23, %cst_18 [1] : vector<8x32xf32> to vector<8xf32>
    %25 = vector.shape_cast %24 : vector<8xf32> to vector<8x1xf32>
    %cst_19 = arith.constant 3.200000e+01 : f32
    %26 = vector.broadcast %cst_19 : f32 to vector<8x1xf32>
    %27 = arith.divf %25, %26 : vector<8x1xf32>
    %28 = vector.broadcast %20 : vector<8x1xf32> to vector<8x32xf32>
    %29 = arith.subf %14, %28 : vector<8x32xf32>
    %cst_20 = arith.constant 9.99999974E-6 : f32
    %30 = vector.broadcast %cst_20 : f32 to vector<8x1xf32>
    %31 = arith.addf %27, %30 : vector<8x1xf32>
    %32 = math.rsqrt %31 : vector<8x1xf32>
    %33 = vector.broadcast %32 : vector<8x1xf32> to vector<8x32xf32>
    %34 = arith.mulf %29, %33 : vector<8x32xf32>
    %35 = vector.broadcast %15 : vector<1x32xf32> to vector<8x32xf32>
    %36 = arith.mulf %34, %35 : vector<8x32xf32>
    %37 = vector.broadcast %16 : vector<1x32xf32> to vector<8x32xf32>
    %38 = arith.addf %36, %37 : vector<8x32xf32>
    %c0_21 = arith.constant 0 : index
    %c0_22 = arith.constant 0 : index
    %39 = vector.load %arg8[%c0_21, %c0_22] : memref<32x64xf32, #tpu.memory_space<vmem>>, vector<32x64xf32>
    %cst_23 = arith.constant dense<0.000000e+00> : vector<8x64xf32>
    %40 = tpu.matmul %38, %39, %cst_23 {dimension_numbers = #tpu.dot_dimension_numbers<[1], [0], [0], [1], [0, 0, 1, 1], [], []>} : vector<8x32xf32>, vector<32x64xf32>, vector<8x64xf32> -> vector<8x64xf32>
    %c0_24 = arith.constant 0 : index
    %c0_25 = arith.constant 0 : index
    %41 = vector.load %arg9[%c0_24, %c0_25] : memref<1x64xf32, #tpu.memory_space<vmem>>, vector<1x64xf32>
    %42 = vector.broadcast %41 : vector<1x64xf32> to vector<8x64xf32>
    %43 = arith.addf %40, %42 : vector<8x64xf32>
    %cst_26 = arith.constant 0.000000e+00 : f32
    %44 = vector.broadcast %cst_26 : f32 to vector<8x64xf32>
    %45 = arith.maximumf %43, %44 : vector<8x64xf32>
    %c0_27 = arith.constant 0 : index
    %c0_28 = arith.constant 0 : index
    %46 = vector.load %arg10[%c0_27, %c0_28] : memref<64x32xf32, #tpu.memory_space<vmem>>, vector<64x32xf32>
    %cst_29 = arith.constant dense<0.000000e+00> : vector<8x32xf32>
    %47 = tpu.matmul %45, %46, %cst_29 {dimension_numbers = #tpu.dot_dimension_numbers<[1], [0], [0], [1], [0, 0, 1, 1], [], []>} : vector<8x64xf32>, vector<64x32xf32>, vector<8x32xf32> -> vector<8x32xf32>
    %c0_30 = arith.constant 0 : index
    %c0_31 = arith.constant 0 : index
    %48 = vector.load %arg11[%c0_30, %c0_31] : memref<1x32xf32, #tpu.memory_space<vmem>>, vector<1x32xf32>
    %49 = vector.broadcast %48 : vector<1x32xf32> to vector<8x32xf32>
    %50 = arith.addf %47, %49 : vector<8x32xf32>
    %51 = arith.addf %38, %50 : vector<8x32xf32>
    %c0_32 = arith.constant 0 : index
    %c0_33 = arith.constant 0 : index
    %52 = vector.load %arg12[%c0_32, %c0_33] : memref<1x32xf32, #tpu.memory_space<vmem>>, vector<1x32xf32>
    %c0_34 = arith.constant 0 : index
    %c0_35 = arith.constant 0 : index
    %53 = vector.load %arg13[%c0_34, %c0_35] : memref<1x32xf32, #tpu.memory_space<vmem>>, vector<1x32xf32>
    %cst_36 = arith.constant dense<0.000000e+00> : vector<8xf32>
    %54 = vector.multi_reduction <add>, %51, %cst_36 [1] : vector<8x32xf32> to vector<8xf32>
    %55 = vector.shape_cast %54 : vector<8xf32> to vector<8x1xf32>
    %cst_37 = arith.constant 3.200000e+01 : f32
    %56 = vector.broadcast %cst_37 : f32 to vector<8x1xf32>
    %57 = arith.divf %55, %56 : vector<8x1xf32>
    %58 = vector.broadcast %57 : vector<8x1xf32> to vector<8x32xf32>
    %59 = arith.subf %51, %58 : vector<8x32xf32>
    %60 = arith.mulf %59, %59 : vector<8x32xf32>
    %cst_38 = arith.constant dense<0.000000e+00> : vector<8xf32>
    %61 = vector.multi_reduction <add>, %60, %cst_38 [1] : vector<8x32xf32> to vector<8xf32>
    %62 = vector.shape_cast %61 : vector<8xf32> to vector<8x1xf32>
    %cst_39 = arith.constant 3.200000e+01 : f32
    %63 = vector.broadcast %cst_39 : f32 to vector<8x1xf32>
    %64 = arith.divf %62, %63 : vector<8x1xf32>
    %65 = vector.broadcast %57 : vector<8x1xf32> to vector<8x32xf32>
    %66 = arith.subf %51, %65 : vector<8x32xf32>
    %cst_40 = arith.constant 9.99999974E-6 : f32
    %67 = vector.broadcast %cst_40 : f32 to vector<8x1xf32>
    %68 = arith.addf %64, %67 : vector<8x1xf32>
    %69 = math.rsqrt %68 : vector<8x1xf32>
    %70 = vector.broadcast %69 : vector<8x1xf32> to vector<8x32xf32>
    %71 = arith.mulf %66, %70 : vector<8x32xf32>
    %72 = vector.broadcast %52 : vector<1x32xf32> to vector<8x32xf32>
    %73 = arith.mulf %71, %72 : vector<8x32xf32>
    %74 = vector.broadcast %53 : vector<1x32xf32> to vector<8x32xf32>
    %75 = arith.addf %73, %74 : vector<8x32xf32>
    %c0_41 = arith.constant 0 : index
    %c0_42 = arith.constant 0 : index
    %c0_43 = arith.constant 0 : index
    %76 = vector.load %arg14[%c0_41, %c0_42, %c0_43] : memref<1x8x32xf32, #tpu.memory_space<vmem>>, vector<1x8x32xf32>
    %77 = vector.shape_cast %76 : vector<1x8x32xf32> to vector<8x32xf32>
    %78 = vector.shape_cast %75 : vector<8x32xf32> to vector<1x8x32xf32>
    tpu.vector_store %arg14[%c0_41, %c0_42, %c0_43], %78 {strides = array<i32>} : memref<1x8x32xf32, #tpu.memory_space<vmem>>, vector<1x8x32xf32>,
    return
  }
  func.func @transform_0(%arg0: i32) -> (i32, i32, i32) {
    %c0_i32 = arith.constant 0 : i32
    %c0_i32_0 = arith.constant 0 : i32
    %c0_i32_1 = arith.constant 0 : i32
    return %arg0, %c0_i32, %c0_i32_0 : i32, i32, i32
  }
  func.func @transform_1(%arg0: i32) -> (i32, i32) {
    %c0_i32 = arith.constant 0 : i32
    %c0_i32_0 = arith.constant 0 : i32
    %c0_i32_1 = arith.constant 0 : i32
    return %c0_i32, %c0_i32_0 : i32, i32
  }
  func.func @transform_2(%arg0: i32) -> (i32, i32) {
    %c0_i32 = arith.constant 0 : i32
    %c0_i32_0 = arith.constant 0 : i32
    %c0_i32_1 = arith.constant 0 : i32
    return %c0_i32, %c0_i32_0 : i32, i32
  }
  func.func @transform_3(%arg0: i32) -> (i32, i32) {
    %c0_i32 = arith.constant 0 : i32
    %c0_i32_0 = arith.constant 0 : i32
    %c0_i32_1 = arith.constant 0 : i32
    return %c0_i32, %c0_i32_0 : i32, i32
  }
  func.func @transform_4(%arg0: i32) -> (i32, i32) {
    %c0_i32 = arith.constant 0 : i32
    %c0_i32_0 = arith.constant 0 : i32
    %c0_i32_1 = arith.constant 0 : i32
    return %c0_i32, %c0_i32_0 : i32, i32
  }
  func.func @transform_5(%arg0: i32) -> (i32, i32) {
    %c0_i32 = arith.constant 0 : i32
    %c0_i32_0 = arith.constant 0 : i32
    %c0_i32_1 = arith.constant 0 : i32
    return %c0_i32, %c0_i32_0 : i32, i32
  }
  func.func @transform_6(%arg0: i32) -> (i32, i32) {
    %c0_i32 = arith.constant 0 : i32
    %c0_i32_0 = arith.constant 0 : i32
    %c0_i32_1 = arith.constant 0 : i32
    return %c0_i32, %c0_i32_0 : i32, i32
  }
  func.func @transform_7(%arg0: i32) -> (i32, i32) {
    %c0_i32 = arith.constant 0 : i32
    %c0_i32_0 = arith.constant 0 : i32
    %c0_i32_1 = arith.constant 0 : i32
    return %c0_i32, %c0_i32_0 : i32, i32
  }
  func.func @transform_8(%arg0: i32) -> (i32, i32) {
    %c0_i32 = arith.constant 0 : i32
    %c0_i32_0 = arith.constant 0 : i32
    %c0_i32_1 = arith.constant 0 : i32
    return %c0_i32, %c0_i32_0 : i32, i32
  }
  func.func @transform_9(%arg0: i32) -> (i32, i32) {
    %c0_i32 = arith.constant 0 : i32
    %c0_i32_0 = arith.constant 0 : i32
    %c0_i32_1 = arith.constant 0 : i32
    return %c0_i32, %c0_i32_0 : i32, i32
  }
  func.func @transform_10(%arg0: i32) -> (i32, i32) {
    %c0_i32 = arith.constant 0 : i32
    %c0_i32_0 = arith.constant 0 : i32
    %c0_i32_1 = arith.constant 0 : i32
    return %c0_i32, %c0_i32_0 : i32, i32
  }
  func.func @transform_11(%arg0: i32) -> (i32, i32) {
    %c0_i32 = arith.constant 0 : i32
    %c0_i32_0 = arith.constant 0 : i32
    %c0_i32_1 = arith.constant 0 : i32
    return %c0_i32, %c0_i32_0 : i32, i32
  }
  func.func @transform_12(%arg0: i32) -> (i32, i32) {
    %c0_i32 = arith.constant 0 : i32
    %c0_i32_0 = arith.constant 0 : i32
    %c0_i32_1 = arith.constant 0 : i32
    return %c0_i32, %c0_i32_0 : i32, i32
  }
  func.func @transform_13(%arg0: i32) -> (i32, i32, i32) {
    %c0_i32 = arith.constant 0 : i32
    %c0_i32_0 = arith.constant 0 : i32
    %c0_i32_1 = arith.constant 0 : i32
    return %arg0, %c0_i32, %c0_i32_0 : i32, i32, i32
  }
}

module attributes {stable_mosaic.version = 11 : i64} {
  func.func @_decoder_block_kernel(%arg0: i32, %arg1: memref<1x8x32xf32, #tpu.memory_space<vmem>>, %arg2: memref<1x8x32xf32, #tpu.memory_space<vmem>>, %arg3: memref<32x32xf32, #tpu.memory_space<vmem>>, %arg4: memref<1x32xf32, #tpu.memory_space<vmem>>, %arg5: memref<32x32xf32, #tpu.memory_space<vmem>>, %arg6: memref<1x32xf32, #tpu.memory_space<vmem>>, %arg7: memref<1x32xf32, #tpu.memory_space<vmem>>, %arg8: memref<1x32xf32, #tpu.memory_space<vmem>>, %arg9: memref<32x32xf32, #tpu.memory_space<vmem>>, %arg10: memref<1x32xf32, #tpu.memory_space<vmem>>, %arg11: memref<32x32xf32, #tpu.memory_space<vmem>>, %arg12: memref<1x32xf32, #tpu.memory_space<vmem>>, %arg13: memref<1x32xf32, #tpu.memory_space<vmem>>, %arg14: memref<1x32xf32, #tpu.memory_space<vmem>>, %arg15: memref<32x64xf32, #tpu.memory_space<vmem>>, %arg16: memref<1x64xf32, #tpu.memory_space<vmem>>, %arg17: memref<64x32xf32, #tpu.memory_space<vmem>>, %arg18: memref<1x32xf32, #tpu.memory_space<vmem>>, %arg19: memref<1x32xf32, #tpu.memory_space<vmem>>, %arg20: memref<1x32xf32, #tpu.memory_space<vmem>>, %arg21: memref<1x8x32xf32, #tpu.memory_space<vmem>>) attributes {dimension_semantics = [#tpu.dimension_semantics<parallel>], iteration_bounds = array<i64: 2>, scalar_prefetch = 0 : i64, scratch_operands = 0 : i64, tpu.core_type = #tpu.core_type<tc>, window_params = [{transform_indices = @transform_0, window_bounds = array<i64: 1, 8, 32>}, {transform_indices = @transform_1, window_bounds = array<i64: 1, 8, 32>}, {pipeline_mode = #tpu.pipeline_mode<synchronous>, transform_indices = @transform_2, window_bounds = array<i64: 32, 32>}, {pipeline_mode = #tpu.pipeline_mode<synchronous>, transform_indices = @transform_3, window_bounds = array<i64: 1, 32>}, {pipeline_mode = #tpu.pipeline_mode<synchronous>, transform_indices = @transform_4, window_bounds = array<i64: 32, 32>}, {pipeline_mode = #tpu.pipeline_mode<synchronous>, transform_indices = @transform_5, window_bounds = array<i64: 1, 32>}, {pipeline_mode = #tpu.pipeline_mode<synchronous>, transform_indices = @transform_6, window_bounds = array<i64: 1, 32>}, {pipeline_mode = #tpu.pipeline_mode<synchronous>, transform_indices = @transform_7, window_bounds = array<i64: 1, 32>}, {pipeline_mode = #tpu.pipeline_mode<synchronous>, transform_indices = @transform_8, window_bounds = array<i64: 32, 32>}, {pipeline_mode = #tpu.pipeline_mode<synchronous>, transform_indices = @transform_9, window_bounds = array<i64: 1, 32>}, {pipeline_mode = #tpu.pipeline_mode<synchronous>, transform_indices = @transform_10, window_bounds = array<i64: 32, 32>}, {pipeline_mode = #tpu.pipeline_mode<synchronous>, transform_indices = @transform_11, window_bounds = array<i64: 1, 32>}, {pipeline_mode = #tpu.pipeline_mode<synchronous>, transform_indices = @transform_12, window_bounds = array<i64: 1, 32>}, {pipeline_mode = #tpu.pipeline_mode<synchronous>, transform_indices = @transform_13, window_bounds = array<i64: 1, 32>}, {pipeline_mode = #tpu.pipeline_mode<synchronous>, transform_indices = @transform_14, window_bounds = array<i64: 32, 64>}, {pipeline_mode = #tpu.pipeline_mode<synchronous>, transform_indices = @transform_15, window_bounds = array<i64: 1, 64>}, {pipeline_mode = #tpu.pipeline_mode<synchronous>, transform_indices = @transform_16, window_bounds = array<i64: 64, 32>}, {pipeline_mode = #tpu.pipeline_mode<synchronous>, transform_indices = @transform_17, window_bounds = array<i64: 1, 32>}, {pipeline_mode = #tpu.pipeline_mode<synchronous>, transform_indices = @transform_18, window_bounds = array<i64: 1, 32>}, {pipeline_mode = #tpu.pipeline_mode<synchronous>, transform_indices = @transform_19, window_bounds = array<i64: 1, 32>}, {transform_indices = @transform_20, window_bounds = array<i64: 1, 8, 32>}]} {
    %c0 = arith.constant 0 : index
    %c0_0 = arith.constant 0 : index
    %c0_1 = arith.constant 0 : index
    %0 = vector.load %arg1[%c0, %c0_0, %c0_1] : memref<1x8x32xf32, #tpu.memory_space<vmem>>, vector<1x8x32xf32>
    %1 = vector.shape_cast %0 : vector<1x8x32xf32> to vector<8x32xf32>
    %c0_2 = arith.constant 0 : index
    %c0_3 = arith.constant 0 : index
    %c0_4 = arith.constant 0 : index
    %2 = vector.load %arg2[%c0_2, %c0_3, %c0_4] : memref<1x8x32xf32, #tpu.memory_space<vmem>>, vector<1x8x32xf32>
    %3 = vector.shape_cast %2 : vector<1x8x32xf32> to vector<8x32xf32>
    %c0_5 = arith.constant 0 : index
    %c0_6 = arith.constant 0 : index
    %4 = vector.load %arg3[%c0_5, %c0_6] : memref<32x32xf32, #tpu.memory_space<vmem>>, vector<32x32xf32>
    %c0_7 = arith.constant 0 : index
    %c0_8 = arith.constant 0 : index
    %5 = vector.load %arg4[%c0_7, %c0_8] : memref<1x32xf32, #tpu.memory_space<vmem>>, vector<1x32xf32>
    %c0_9 = arith.constant 0 : index
    %c0_10 = arith.constant 0 : index
    %6 = vector.load %arg5[%c0_9, %c0_10] : memref<32x32xf32, #tpu.memory_space<vmem>>, vector<32x32xf32>
    %c0_11 = arith.constant 0 : index
    %c0_12 = arith.constant 0 : index
    %7 = vector.load %arg6[%c0_11, %c0_12] : memref<1x32xf32, #tpu.memory_space<vmem>>, vector<1x32xf32>
    %cst = arith.constant dense<0.000000e+00> : vector<8x32xf32>
    %8 = tpu.matmul %1, %4, %cst {dimension_numbers = #tpu.dot_dimension_numbers<[1], [0], [0], [1], [0, 0, 1, 1], [], []>} : vector<8x32xf32>, vector<32x32xf32>, vector<8x32xf32> -> vector<8x32xf32>
    %9 = vector.broadcast %5 : vector<1x32xf32> to vector<8x32xf32>
    %10 = arith.addf %8, %9 : vector<8x32xf32>
    %cst_13 = arith.constant dense<0.000000e+00> : vector<32xf32>
    %11 = vector.multi_reduction <add>, %10, %cst_13 [0] : vector<8x32xf32> to vector<32xf32>
    %12 = vector.shape_cast %11 : vector<32xf32> to vector<1x32xf32>
    %cst_14 = arith.constant dense<0.000000e+00> : vector<1x32xf32>
    %13 = tpu.matmul %12, %6, %cst_14 {dimension_numbers = #tpu.dot_dimension_numbers<[1], [0], [0], [1], [0, 0, 1, 1], [], []>} : vector<1x32xf32>, vector<32x32xf32>, vector<1x32xf32> -> vector<1x32xf32>
    %14 = arith.addf %13, %7 : vector<1x32xf32>
    %15 = vector.broadcast %14 : vector<1x32xf32> to vector<8x32xf32>
    %16 = arith.addf %1, %15 : vector<8x32xf32>
    %c0_15 = arith.constant 0 : index
    %c0_16 = arith.constant 0 : index
    %17 = vector.load %arg7[%c0_15, %c0_16] : memref<1x32xf32, #tpu.memory_space<vmem>>, vector<1x32xf32>
    %c0_17 = arith.constant 0 : index
    %c0_18 = arith.constant 0 : index
    %18 = vector.load %arg8[%c0_17, %c0_18] : memref<1x32xf32, #tpu.memory_space<vmem>>, vector<1x32xf32>
    %cst_19 = arith.constant dense<0.000000e+00> : vector<8xf32>
    %19 = vector.multi_reduction <add>, %16, %cst_19 [1] : vector<8x32xf32> to vector<8xf32>
    %20 = vector.shape_cast %19 : vector<8xf32> to vector<8x1xf32>
    %cst_20 = arith.constant 3.200000e+01 : f32
    %21 = vector.broadcast %cst_20 : f32 to vector<8x1xf32>
    %22 = arith.divf %20, %21 : vector<8x1xf32>
    %23 = vector.broadcast %22 : vector<8x1xf32> to vector<8x32xf32>
    %24 = arith.subf %16, %23 : vector<8x32xf32>
    %25 = arith.mulf %24, %24 : vector<8x32xf32>
    %cst_21 = arith.constant dense<0.000000e+00> : vector<8xf32>
    %26 = vector.multi_reduction <add>, %25, %cst_21 [1] : vector<8x32xf32> to vector<8xf32>
    %27 = vector.shape_cast %26 : vector<8xf32> to vector<8x1xf32>
    %cst_22 = arith.constant 3.200000e+01 : f32
    %28 = vector.broadcast %cst_22 : f32 to vector<8x1xf32>
    %29 = arith.divf %27, %28 : vector<8x1xf32>
    %30 = vector.broadcast %22 : vector<8x1xf32> to vector<8x32xf32>
    %31 = arith.subf %16, %30 : vector<8x32xf32>
    %cst_23 = arith.constant 9.99999974E-6 : f32
    %32 = vector.broadcast %cst_23 : f32 to vector<8x1xf32>
    %33 = arith.addf %29, %32 : vector<8x1xf32>
    %34 = math.rsqrt %33 : vector<8x1xf32>
    %35 = vector.broadcast %34 : vector<8x1xf32> to vector<8x32xf32>
    %36 = arith.mulf %31, %35 : vector<8x32xf32>
    %37 = vector.broadcast %17 : vector<1x32xf32> to vector<8x32xf32>
    %38 = arith.mulf %36, %37 : vector<8x32xf32>
    %39 = vector.broadcast %18 : vector<1x32xf32> to vector<8x32xf32>
    %40 = arith.addf %38, %39 : vector<8x32xf32>
    %c0_24 = arith.constant 0 : index
    %c0_25 = arith.constant 0 : index
    %41 = vector.load %arg9[%c0_24, %c0_25] : memref<32x32xf32, #tpu.memory_space<vmem>>, vector<32x32xf32>
    %c0_26 = arith.constant 0 : index
    %c0_27 = arith.constant 0 : index
    %42 = vector.load %arg10[%c0_26, %c0_27] : memref<1x32xf32, #tpu.memory_space<vmem>>, vector<1x32xf32>
    %c0_28 = arith.constant 0 : index
    %c0_29 = arith.constant 0 : index
    %43 = vector.load %arg11[%c0_28, %c0_29] : memref<32x32xf32, #tpu.memory_space<vmem>>, vector<32x32xf32>
    %c0_30 = arith.constant 0 : index
    %c0_31 = arith.constant 0 : index
    %44 = vector.load %arg12[%c0_30, %c0_31] : memref<1x32xf32, #tpu.memory_space<vmem>>, vector<1x32xf32>
    %cst_32 = arith.constant dense<0.000000e+00> : vector<8x32xf32>
    %45 = tpu.matmul %3, %41, %cst_32 {dimension_numbers = #tpu.dot_dimension_numbers<[1], [0], [0], [1], [0, 0, 1, 1], [], []>} : vector<8x32xf32>, vector<32x32xf32>, vector<8x32xf32> -> vector<8x32xf32>
    %46 = vector.broadcast %42 : vector<1x32xf32> to vector<8x32xf32>
    %47 = arith.addf %45, %46 : vector<8x32xf32>
    %cst_33 = arith.constant dense<0.000000e+00> : vector<32xf32>
    %48 = vector.multi_reduction <add>, %47, %cst_33 [0] : vector<8x32xf32> to vector<32xf32>
    %49 = vector.shape_cast %48 : vector<32xf32> to vector<1x32xf32>
    %cst_34 = arith.constant dense<0.000000e+00> : vector<1x32xf32>
    %50 = tpu.matmul %49, %43, %cst_34 {dimension_numbers = #tpu.dot_dimension_numbers<[1], [0], [0], [1], [0, 0, 1, 1], [], []>} : vector<1x32xf32>, vector<32x32xf32>, vector<1x32xf32> -> vector<1x32xf32>
    %51 = arith.addf %50, %44 : vector<1x32xf32>
    %52 = vector.broadcast %51 : vector<1x32xf32> to vector<8x32xf32>
    %53 = arith.addf %40, %52 : vector<8x32xf32>
    %c0_35 = arith.constant 0 : index
    %c0_36 = arith.constant 0 : index
    %54 = vector.load %arg13[%c0_35, %c0_36] : memref<1x32xf32, #tpu.memory_space<vmem>>, vector<1x32xf32>
    %c0_37 = arith.constant 0 : index
    %c0_38 = arith.constant 0 : index
    %55 = vector.load %arg14[%c0_37, %c0_38] : memref<1x32xf32, #tpu.memory_space<vmem>>, vector<1x32xf32>
    %cst_39 = arith.constant dense<0.000000e+00> : vector<8xf32>
    %56 = vector.multi_reduction <add>, %53, %cst_39 [1] : vector<8x32xf32> to vector<8xf32>
    %57 = vector.shape_cast %56 : vector<8xf32> to vector<8x1xf32>
    %cst_40 = arith.constant 3.200000e+01 : f32
    %58 = vector.broadcast %cst_40 : f32 to vector<8x1xf32>
    %59 = arith.divf %57, %58 : vector<8x1xf32>
    %60 = vector.broadcast %59 : vector<8x1xf32> to vector<8x32xf32>
    %61 = arith.subf %53, %60 : vector<8x32xf32>
    %62 = arith.mulf %61, %61 : vector<8x32xf32>
    %cst_41 = arith.constant dense<0.000000e+00> : vector<8xf32>
    %63 = vector.multi_reduction <add>, %62, %cst_41 [1] : vector<8x32xf32> to vector<8xf32>
    %64 = vector.shape_cast %63 : vector<8xf32> to vector<8x1xf32>
    %cst_42 = arith.constant 3.200000e+01 : f32
    %65 = vector.broadcast %cst_42 : f32 to vector<8x1xf32>
    %66 = arith.divf %64, %65 : vector<8x1xf32>
    %67 = vector.broadcast %59 : vector<8x1xf32> to vector<8x32xf32>
    %68 = arith.subf %53, %67 : vector<8x32xf32>
    %cst_43 = arith.constant 9.99999974E-6 : f32
    %69 = vector.broadcast %cst_43 : f32 to vector<8x1xf32>
    %70 = arith.addf %66, %69 : vector<8x1xf32>
    %71 = math.rsqrt %70 : vector<8x1xf32>
    %72 = vector.broadcast %71 : vector<8x1xf32> to vector<8x32xf32>
    %73 = arith.mulf %68, %72 : vector<8x32xf32>
    %74 = vector.broadcast %54 : vector<1x32xf32> to vector<8x32xf32>
    %75 = arith.mulf %73, %74 : vector<8x32xf32>
    %76 = vector.broadcast %55 : vector<1x32xf32> to vector<8x32xf32>
    %77 = arith.addf %75, %76 : vector<8x32xf32>
    %c0_44 = arith.constant 0 : index
    %c0_45 = arith.constant 0 : index
    %78 = vector.load %arg15[%c0_44, %c0_45] : memref<32x64xf32, #tpu.memory_space<vmem>>, vector<32x64xf32>
    %cst_46 = arith.constant dense<0.000000e+00> : vector<8x64xf32>
    %79 = tpu.matmul %77, %78, %cst_46 {dimension_numbers = #tpu.dot_dimension_numbers<[1], [0], [0], [1], [0, 0, 1, 1], [], []>} : vector<8x32xf32>, vector<32x64xf32>, vector<8x64xf32> -> vector<8x64xf32>
    %c0_47 = arith.constant 0 : index
    %c0_48 = arith.constant 0 : index
    %80 = vector.load %arg16[%c0_47, %c0_48] : memref<1x64xf32, #tpu.memory_space<vmem>>, vector<1x64xf32>
    %81 = vector.broadcast %80 : vector<1x64xf32> to vector<8x64xf32>
    %82 = arith.addf %79, %81 : vector<8x64xf32>
    %cst_49 = arith.constant 0.000000e+00 : f32
    %83 = vector.broadcast %cst_49 : f32 to vector<8x64xf32>
    %84 = arith.maximumf %82, %83 : vector<8x64xf32>
    %c0_50 = arith.constant 0 : index
    %c0_51 = arith.constant 0 : index
    %85 = vector.load %arg17[%c0_50, %c0_51] : memref<64x32xf32, #tpu.memory_space<vmem>>, vector<64x32xf32>
    %cst_52 = arith.constant dense<0.000000e+00> : vector<8x32xf32>
    %86 = tpu.matmul %84, %85, %cst_52 {dimension_numbers = #tpu.dot_dimension_numbers<[1], [0], [0], [1], [0, 0, 1, 1], [], []>} : vector<8x64xf32>, vector<64x32xf32>, vector<8x32xf32> -> vector<8x32xf32>
    %c0_53 = arith.constant 0 : index
    %c0_54 = arith.constant 0 : index
    %87 = vector.load %arg18[%c0_53, %c0_54] : memref<1x32xf32, #tpu.memory_space<vmem>>, vector<1x32xf32>
    %88 = vector.broadcast %87 : vector<1x32xf32> to vector<8x32xf32>
    %89 = arith.addf %86, %88 : vector<8x32xf32>
    %90 = arith.addf %77, %89 : vector<8x32xf32>
    %c0_55 = arith.constant 0 : index
    %c0_56 = arith.constant 0 : index
    %91 = vector.load %arg19[%c0_55, %c0_56] : memref<1x32xf32, #tpu.memory_space<vmem>>, vector<1x32xf32>
    %c0_57 = arith.constant 0 : index
    %c0_58 = arith.constant 0 : index
    %92 = vector.load %arg20[%c0_57, %c0_58] : memref<1x32xf32, #tpu.memory_space<vmem>>, vector<1x32xf32>
    %cst_59 = arith.constant dense<0.000000e+00> : vector<8xf32>
    %93 = vector.multi_reduction <add>, %90, %cst_59 [1] : vector<8x32xf32> to vector<8xf32>
    %94 = vector.shape_cast %93 : vector<8xf32> to vector<8x1xf32>
    %cst_60 = arith.constant 3.200000e+01 : f32
    %95 = vector.broadcast %cst_60 : f32 to vector<8x1xf32>
    %96 = arith.divf %94, %95 : vector<8x1xf32>
    %97 = vector.broadcast %96 : vector<8x1xf32> to vector<8x32xf32>
    %98 = arith.subf %90, %97 : vector<8x32xf32>
    %99 = arith.mulf %98, %98 : vector<8x32xf32>
    %cst_61 = arith.constant dense<0.000000e+00> : vector<8xf32>
    %100 = vector.multi_reduction <add>, %99, %cst_61 [1] : vector<8x32xf32> to vector<8xf32>
    %101 = vector.shape_cast %100 : vector<8xf32> to vector<8x1xf32>
    %cst_62 = arith.constant 3.200000e+01 : f32
    %102 = vector.broadcast %cst_62 : f32 to vector<8x1xf32>
    %103 = arith.divf %101, %102 : vector<8x1xf32>
    %104 = vector.broadcast %96 : vector<8x1xf32> to vector<8x32xf32>
    %105 = arith.subf %90, %104 : vector<8x32xf32>
    %cst_63 = arith.constant 9.99999974E-6 : f32
    %106 = vector.broadcast %cst_63 : f32 to vector<8x1xf32>
    %107 = arith.addf %103, %106 : vector<8x1xf32>
    %108 = math.rsqrt %107 : vector<8x1xf32>
    %109 = vector.broadcast %108 : vector<8x1xf32> to vector<8x32xf32>
    %110 = arith.mulf %105, %109 : vector<8x32xf32>
    %111 = vector.broadcast %91 : vector<1x32xf32> to vector<8x32xf32>
    %112 = arith.mulf %110, %111 : vector<8x32xf32>
    %113 = vector.broadcast %92 : vector<1x32xf32> to vector<8x32xf32>
    %114 = arith.addf %112, %113 : vector<8x32xf32>
    %c0_64 = arith.constant 0 : index
    %c0_65 = arith.constant 0 : index
    %c0_66 = arith.constant 0 : index
    %115 = vector.load %arg21[%c0_64, %c0_65, %c0_66] : memref<1x8x32xf32, #tpu.memory_space<vmem>>, vector<1x8x32xf32>
    %116 = vector.shape_cast %115 : vector<1x8x32xf32> to vector<8x32xf32>
    %117 = vector.shape_cast %114 : vector<8x32xf32> to vector<1x8x32xf32>
    tpu.vector_store %arg21[%c0_64, %c0_65, %c0_66], %117 {strides = array<i32>} : memref<1x8x32xf32, #tpu.memory_space<vmem>>, vector<1x8x32xf32>,
    return
  }
  func.func @transform_0(%arg0: i32) -> (i32, i32, i32) {
    %c0_i32 = arith.constant 0 : i32
    %c0_i32_0 = arith.constant 0 : i32
    %c0_i32_1 = arith.constant 0 : i32
    return %arg0, %c0_i32, %c0_i32_0 : i32, i32, i32
  }
  func.func @transform_1(%arg0: i32) -> (i32, i32, i32) {
    %c0_i32 = arith.constant 0 : i32
    %c0_i32_0 = arith.constant 0 : i32
    %c0_i32_1 = arith.constant 0 : i32
    return %arg0, %c0_i32, %c0_i32_0 : i32, i32, i32
  }
  func.func @transform_2(%arg0: i32) -> (i32, i32) {
    %c0_i32 = arith.constant 0 : i32
    %c0_i32_0 = arith.constant 0 : i32
    %c0_i32_1 = arith.constant 0 : i32
    return %c0_i32, %c0_i32_0 : i32, i32
  }
  func.func @transform_3(%arg0: i32) -> (i32, i32) {
    %c0_i32 = arith.constant 0 : i32
    %c0_i32_0 = arith.constant 0 : i32
    %c0_i32_1 = arith.constant 0 : i32
    return %c0_i32, %c0_i32_0 : i32, i32
  }
  func.func @transform_4(%arg0: i32) -> (i32, i32) {
    %c0_i32 = arith.constant 0 : i32
    %c0_i32_0 = arith.constant 0 : i32
    %c0_i32_1 = arith.constant 0 : i32
    return %c0_i32, %c0_i32_0 : i32, i32
  }
  func.func @transform_5(%arg0: i32) -> (i32, i32) {
    %c0_i32 = arith.constant 0 : i32
    %c0_i32_0 = arith.constant 0 : i32
    %c0_i32_1 = arith.constant 0 : i32
    return %c0_i32, %c0_i32_0 : i32, i32
  }
  func.func @transform_6(%arg0: i32) -> (i32, i32) {
    %c0_i32 = arith.constant 0 : i32
    %c0_i32_0 = arith.constant 0 : i32
    %c0_i32_1 = arith.constant 0 : i32
    return %c0_i32, %c0_i32_0 : i32, i32
  }
  func.func @transform_7(%arg0: i32) -> (i32, i32) {
    %c0_i32 = arith.constant 0 : i32
    %c0_i32_0 = arith.constant 0 : i32
    %c0_i32_1 = arith.constant 0 : i32
    return %c0_i32, %c0_i32_0 : i32, i32
  }
  func.func @transform_8(%arg0: i32) -> (i32, i32) {
    %c0_i32 = arith.constant 0 : i32
    %c0_i32_0 = arith.constant 0 : i32
    %c0_i32_1 = arith.constant 0 : i32
    return %c0_i32, %c0_i32_0 : i32, i32
  }
  func.func @transform_9(%arg0: i32) -> (i32, i32) {
    %c0_i32 = arith.constant 0 : i32
    %c0_i32_0 = arith.constant 0 : i32
    %c0_i32_1 = arith.constant 0 : i32
    return %c0_i32, %c0_i32_0 : i32, i32
  }
  func.func @transform_10(%arg0: i32) -> (i32, i32) {
    %c0_i32 = arith.constant 0 : i32
    %c0_i32_0 = arith.constant 0 : i32
    %c0_i32_1 = arith.constant 0 : i32
    return %c0_i32, %c0_i32_0 : i32, i32
  }
  func.func @transform_11(%arg0: i32) -> (i32, i32) {
    %c0_i32 = arith.constant 0 : i32
    %c0_i32_0 = arith.constant 0 : i32
    %c0_i32_1 = arith.constant 0 : i32
    return %c0_i32, %c0_i32_0 : i32, i32
  }
  func.func @transform_12(%arg0: i32) -> (i32, i32) {
    %c0_i32 = arith.constant 0 : i32
    %c0_i32_0 = arith.constant 0 : i32
    %c0_i32_1 = arith.constant 0 : i32
    return %c0_i32, %c0_i32_0 : i32, i32
  }
  func.func @transform_13(%arg0: i32) -> (i32, i32) {
    %c0_i32 = arith.constant 0 : i32
    %c0_i32_0 = arith.constant 0 : i32
    %c0_i32_1 = arith.constant 0 : i32
    return %c0_i32, %c0_i32_0 : i32, i32
  }
  func.func @transform_14(%arg0: i32) -> (i32, i32) {
    %c0_i32 = arith.constant 0 : i32
    %c0_i32_0 = arith.constant 0 : i32
    %c0_i32_1 = arith.constant 0 : i32
    return %c0_i32, %c0_i32_0 : i32, i32
  }
  func.func @transform_15(%arg0: i32) -> (i32, i32) {
    %c0_i32 = arith.constant 0 : i32
    %c0_i32_0 = arith.constant 0 : i32
    %c0_i32_1 = arith.constant 0 : i32
    return %c0_i32, %c0_i32_0 : i32, i32
  }
  func.func @transform_16(%arg0: i32) -> (i32, i32) {
    %c0_i32 = arith.constant 0 : i32
    %c0_i32_0 = arith.constant 0 : i32
    %c0_i32_1 = arith.constant 0 : i32
    return %c0_i32, %c0_i32_0 : i32, i32
  }
  func.func @transform_17(%arg0: i32) -> (i32, i32) {
    %c0_i32 = arith.constant 0 : i32
    %c0_i32_0 = arith.constant 0 : i32
    %c0_i32_1 = arith.constant 0 : i32
    return %c0_i32, %c0_i32_0 : i32, i32
  }
  func.func @transform_18(%arg0: i32) -> (i32, i32) {
    %c0_i32 = arith.constant 0 : i32
    %c0_i32_0 = arith.constant 0 : i32
    %c0_i32_1 = arith.constant 0 : i32
    return %c0_i32, %c0_i32_0 : i32, i32
  }
  func.func @transform_19(%arg0: i32) -> (i32, i32) {
    %c0_i32 = arith.constant 0 : i32
    %c0_i32_0 = arith.constant 0 : i32
    %c0_i32_1 = arith.constant 0 : i32
    return %c0_i32, %c0_i32_0 : i32, i32
  }
  func.func @transform_20(%arg0: i32) -> (i32, i32, i32) {
    %c0_i32 = arith.constant 0 : i32
    %c0_i32_0 = arith.constant 0 : i32
    %c0_i32_1 = arith.constant 0 : i32
    return %arg0, %c0_i32, %c0_i32_0 : i32, i32, i32
  }
}

module attributes {stable_mosaic.version = 11 : i64} {
  func.func @_vocab_proj_kernel(%arg0: i32, %arg1: memref<16x32xf32, #tpu.memory_space<vmem>>, %arg2: memref<32x128xf32, #tpu.memory_space<vmem>>, %arg3: memref<1x128xf32, #tpu.memory_space<vmem>>, %arg4: memref<16x128xf32, #tpu.memory_space<vmem>>) attributes {dimension_semantics = [#tpu.dimension_semantics<arbitrary>], iteration_bounds = array<i64: 1>, scalar_prefetch = 0 : i64, scratch_operands = 0 : i64, tpu.core_type = #tpu.core_type<tc>, window_params = [{pipeline_mode = #tpu.pipeline_mode<synchronous>, transform_indices = @transform_0, window_bounds = array<i64: 16, 32>}, {pipeline_mode = #tpu.pipeline_mode<synchronous>, transform_indices = @transform_1, window_bounds = array<i64: 32, 128>}, {pipeline_mode = #tpu.pipeline_mode<synchronous>, transform_indices = @transform_2, window_bounds = array<i64: 1, 128>}, {pipeline_mode = #tpu.pipeline_mode<synchronous>, transform_indices = @transform_3, window_bounds = array<i64: 16, 128>}]} {
    %c0 = arith.constant 0 : index
    %c0_0 = arith.constant 0 : index
    %0 = vector.load %arg1[%c0, %c0_0] : memref<16x32xf32, #tpu.memory_space<vmem>>, vector<16x32xf32>
    %c0_1 = arith.constant 0 : index
    %c0_2 = arith.constant 0 : index
    %1 = vector.load %arg2[%c0_1, %c0_2] : memref<32x128xf32, #tpu.memory_space<vmem>>, vector<32x128xf32>
    %cst = arith.constant dense<0.000000e+00> : vector<16x128xf32>
    %2 = tpu.matmul %0, %1, %cst {dimension_numbers = #tpu.dot_dimension_numbers<[1], [0], [0], [1], [0, 0, 1, 1], [], []>} : vector<16x32xf32>, vector<32x128xf32>, vector<16x128xf32> -> vector<16x128xf32>
    %c0_3 = arith.constant 0 : index
    %c0_4 = arith.constant 0 : index
    %3 = vector.load %arg3[%c0_3, %c0_4] : memref<1x128xf32, #tpu.memory_space<vmem>>, vector<1x128xf32>
    %4 = vector.broadcast %3 : vector<1x128xf32> to vector<16x128xf32>
    %5 = arith.addf %2, %4 : vector<16x128xf32>
    %c0_5 = arith.constant 0 : index
    %c0_6 = arith.constant 0 : index
    %6 = vector.load %arg4[%c0_5, %c0_6] : memref<16x128xf32, #tpu.memory_space<vmem>>, vector<16x128xf32>
    tpu.vector_store %arg4[%c0_5, %c0_6], %5 {strides = array<i32>} : memref<16x128xf32, #tpu.memory_space<vmem>>, vector<16x128xf32>,
    return
  }
  func.func @transform_0(%arg0: i32) -> (i32, i32) {
    %c0_i32 = arith.constant 0 : i32
    %c0_i32_0 = arith.constant 0 : i32
    %c0_i32_1 = arith.constant 0 : i32
    return %c0_i32, %c0_i32_0 : i32, i32
  }
  func.func @transform_1(%arg0: i32) -> (i32, i32) {
    %c0_i32 = arith.constant 0 : i32
    %c0_i32_0 = arith.constant 0 : i32
    %c0_i32_1 = arith.constant 0 : i32
    return %c0_i32, %c0_i32_0 : i32, i32
  }
  func.func @transform_2(%arg0: i32) -> (i32, i32) {
    %c0_i32 = arith.constant 0 : i32
    %c0_i32_0 = arith.constant 0 : i32
    %c0_i32_1 = arith.constant 0 : i32
    return %c0_i32, %c0_i32_0 : i32, i32
  }
  func.func @transform_3(%arg0: i32) -> (i32, i32) {
    %c0_i32 = arith.constant 0 : i32
    %c0_i32_0 = arith.constant 0 : i32
    %c0_i32_1 = arith.constant 0 : i32
    return %c0_i32, %c0_i32_0 : i32, i32
  }
}

</mosaic_0001>

<llo_original>
// kernel: transformer_forward.9
$region0: #{transformer_forward.9}
  #allocation0 [shape = 'u32[]', space=smem, size = 0x4, offset = 0x4, fixed_abs, tag = 'smem constant byte address 0x4 - core index']
  #allocation1 [shape = 'u32[144,128]{1,0:T(1,128)}', space=vmem, size = 0x12000, scoped, tag = 'internal scratch']
  %s0 = inlined_call_operand.vmem [shape: f32[16,32], index: 0, kind: input, shape index: {}]
  %s1 = inlined_call_operand.vmem [shape: f32[32,128], index: 1, kind: input, shape index: {}]
  %s2 = inlined_call_operand.vmem [shape: f32[1,128], index: 2, kind: input, shape index: {}]
  %s3 = inlined_call_operand.vmem [shape: f32[16,128], index: 3, kind: output, shape index: {}]
  %s4 = sld [smem:[#allocation0]]
  $region22: #{transformer_forward.9} parent=0
    _
  %s6 = ssub.s32 1, %s4
  %s7 = scalar_select 0, %s6, %s4
  // Predicated region
  $region2: #{transformer_forward.9} parent=0 // pred_check
    _
  $region3: #{transformer_forward.9} parent=0 // pred_check_branch
    %9 = sbr.rel (0) target = $region5
  $region4: #{transformer_forward.9} parent=0 // pred_region
    _
  $region5: #{transformer_forward.9} parent=0 // pred_fallthru
    _
  // Predicated region
  $region6: #{transformer_forward.9} parent=0 // pred_check
    _
  $region7: #{transformer_forward.9} parent=0 // pred_check_branch
    %11 = sbr.rel (0) target = $region9
  $region8: #{transformer_forward.9} parent=0 // pred_region
    _
  $region9: #{transformer_forward.9} parent=0 // pred_fallthru
    _
  // Predicated region
  $region10: #{transformer_forward.9} parent=0 // pred_check
    _
  $region11: #{transformer_forward.9} parent=0 // pred_check_branch
    %13 = sbr.rel (0) target = $region13
  $region12: #{transformer_forward.9} parent=0 // pred_region
    _
  $region13: #{transformer_forward.9} parent=0 // pred_fallthru
    _
  %v14 = vld [vmem:[%s0] sm:$0xff]
  %v15 = vld [vmem:[%s0 + $0x8] sm:$0xff]
  %v16 = vld [vmem:[%s1] sm:$0xff]
  %v17 = vld [vmem:[%s1 + $0x8] sm:$0xff]
  %v18 = vld [vmem:[%s1 + $0x10] sm:$0xff]
  %v19 = vld [vmem:[%s1 + $0x18] sm:$0xff]
  %v20 = vld [vmem:[%s2] sm:$0x1]
  %v22 = vlaneseq
  %v23 = vshrl.u32 %v22, 7
  %v24 = vsub.s32 0, %v23
  %v25 = vrot.slane %v20, %v24
  %vm27 = vcmask 261120
  %v29 = vsel %vm27, %v14, 0
  %v32 = vsel %vm27, %v15, 0
  %34 = vmatprep.subr.mxu0 0.0
  %35 = vmatpush1.msra.mxu0 %v16
  %36 = vmatprep.subr.mxu0 0.0
  %37 = vmatpush1.msra.mxu0 %v17
  %38 = vmatprep.subr.mxu0 0.0
  %39 = vmatpush1.msra.mxu0 %v18
  %40 = vmatprep.subr.mxu0 0.0
  %41 = vmatpush1.msra.mxu0 %v19
  %42 = vmatprep.subr.mxu0 0.0
  %43 = vmatpush1.msra.mxu0 0.0
  %44 = vmatprep.subr.mxu0 0.0
  %45 = vmatpush1.msra.mxu0 0.0
  %46 = vmatprep.subr.mxu0 0.0
  %47 = vmatpush1.msra.mxu0 0.0
  %48 = vmatprep.subr.mxu0 0.0
  %49 = vmatpush1.msra.mxu0 0.0
  %50 = vmatprep.subr.mxu0 0.0
  %51 = vmatpush1.msra.mxu0 0.0
  %52 = vmatprep.subr.mxu0 0.0
  %53 = vmatpush1.msra.mxu0 0.0
  %54 = vmatprep.subr.mxu0 0.0
  %55 = vmatpush1.msra.mxu0 0.0
  %56 = vmatprep.subr.mxu0 0.0
  %57 = vmatpush1.msra.mxu0 0.0
  %58 = vmatprep.subr.mxu0 0.0
  %59 = vmatpush1.msra.mxu0 0.0
  %60 = vmatprep.subr.mxu0 0.0
  %61 = vmatpush1.msra.mxu0 0.0
  %62 = vmatprep.subr.mxu0 0.0
  %63 = vmatpush1.msra.mxu0 0.0
  %64 = vmatprep.subr.mxu0 0.0
  %65 = vmatpush1.msra.mxu0 0.0
  %66 = vmatprep.subr.mxu0 0.0
  %67 = vmatpush1.msra.mxu0 0.0
  %68 = vmatprep.subr.mxu0 0.0
  %69 = vmatpush1.msra.mxu0 0.0
  %70 = vmatprep.subr.mxu0 0.0
  %71 = vmatpush1.msra.mxu0 0.0
  %72 = vmatprep.subr.mxu0 0.0
  %73 = vmatpush1.msra.mxu0 0.0
  %74 = vmatprep.subr.mxu0 0.0
  %75 = vmatpush1.msra.mxu0 0.0
  %76 = vmatprep.subr.mxu0 0.0
  %77 = vmatpush1.msra.mxu0 0.0
  %78 = vmatprep.subr.mxu0 0.0
  %79 = vmatpush1.msra.mxu0 0.0
  %80 = vmatprep.subr.mxu0 0.0
  %81 = vmatpush1.msra.mxu0 0.0
  %82 = vmatprep.subr.mxu0 0.0
  %83 = vmatpush1.msra.mxu0 0.0
  %84 = vmatprep.subr.mxu0 0.0
  %85 = vmatpush1.msra.mxu0 0.0
  %86 = vmatprep.subr.mxu0 0.0
  %87 = vmatpush1.msra.mxu0 0.0
  %88 = vmatprep.subr.mxu0 0.0
  %89 = vmatpush1.msra.mxu0 0.0
  %90 = vmatprep.subr.mxu0 0.0
  %91 = vmatpush1.msra.mxu0 0.0
  %92 = vmatprep.subr.mxu0 0.0
  %93 = vmatpush1.msra.mxu0 0.0
  %94 = vmatprep.subr.mxu0 0.0
  %95 = vmatpush1.msra.mxu0 0.0
  %96 = vmatprep.subr.mxu0 0.0
  %97 = vmatpush1.msra.mxu0 0.0
  %98 = vmatprep.mubr.f32.mxu0 0.0
  %99 = vmatmul.mubr.f32.gmra.mrb[0].mxu0 %v29
  %v100 = vpop.f32.mrb[0].mxu0
  %v101 = vadd.f32 %v25, %v100
  %v102 = vpop.f32.mrb[0].mxu0
  %103 = vmatprep.mubr.f32.mxu0 0.0
  %104 = vmatmul.mubr.f32.gmra.mrb[0].mxu0 %v32
  %v105 = vpop.f32.mrb[0].mxu0
  %v106 = vadd.f32 %v25, %v105
  %v107 = vpop.f32.mrb[0].mxu0
  %108 = vdwg.mxu0
  %109 = vst [vmem:[%s3] sm:$0xff] %v101
  %110 = vst [vmem:[%s3 + $0x8] sm:$0xff] %v106
  // Predicated region
  $region14: #{transformer_forward.9} parent=0 // pred_check
    _
  $region15: #{transformer_forward.9} parent=0 // pred_check_branch
    %112 = sbr.rel (0) target = $region17
  $region16: #{transformer_forward.9} parent=0 // pred_region
    _
  $region17: #{transformer_forward.9} parent=0 // pred_fallthru
    _
  // Predicated region
  $region18: #{transformer_forward.9} parent=0 // pred_check
    _
  $region19: #{transformer_forward.9} parent=0 // pred_check_branch
    %114 = sbr.rel (0) target = $region21
  $region20: #{transformer_forward.9} parent=0 // pred_region
    _
  $region21: #{transformer_forward.9} parent=0 // pred_fallthru
    _

// kernel: transformer_forward.5
$region0: #{transformer_forward.5}
  #allocation0 [shape = 'u32[]', space=smem, size = 0x4, offset = 0x4, fixed_abs, tag = 'smem constant byte address 0x4 - core index']
  #allocation1 [shape = 'u32[144,128]{1,0:T(1,128)}', space=vmem, size = 0x12000, scoped, tag = 'internal scratch']
  %s0 = inlined_call_operand.vmem [shape: f32[2,8,32], index: 0, kind: input, shape index: {}]
  %s1 = inlined_call_operand.vmem [shape: f32[32,32], index: 1, kind: input, shape index: {}]
  %s2 = inlined_call_operand.vmem [shape: f32[1,32], index: 2, kind: input, shape index: {}]
  %s3 = inlined_call_operand.vmem [shape: f32[32,32], index: 3, kind: input, shape index: {}]
  %s4 = inlined_call_operand.vmem [shape: f32[1,32], index: 4, kind: input, shape index: {}]
  %s5 = inlined_call_operand.vmem [shape: f32[1,32], index: 5, kind: input, shape index: {}]
  %s6 = inlined_call_operand.vmem [shape: f32[1,32], index: 6, kind: input, shape index: {}]
  %s7 = inlined_call_operand.vmem [shape: f32[32,64], index: 7, kind: input, shape index: {}]
  %s8 = inlined_call_operand.vmem [shape: f32[1,64], index: 8, kind: input, shape index: {}]
  %s9 = inlined_call_operand.vmem [shape: f32[64,32], index: 9, kind: input, shape index: {}]
  %s10 = inlined_call_operand.vmem [shape: f32[1,32], index: 10, kind: input, shape index: {}]
  %s11 = inlined_call_operand.vmem [shape: f32[1,32], index: 11, kind: input, shape index: {}]
  %s12 = inlined_call_operand.vmem [shape: f32[1,32], index: 12, kind: input, shape index: {}]
  %s13 = inlined_call_operand.vmem [shape: f32[2,8,32], index: 13, kind: output, shape index: {}]
  %s14 = sld [smem:[#allocation0]]
  $region85: #{transformer_forward.5} parent=0
    _
  %s16 = ssub.s32 1, %s14
  %s17 = scalar_select 0, %s16, %s14
  loop: start=0, step=1, limit=4
  $region2: #{transformer_forward.5} parent=0 // loop_pre_header
    _
  $region3: #{transformer_forward.5} parent=0 // loop_header
    %s19 = sphi 0, %s23
    %p20 = scmp.ge.s32.totalorder %s19, 4
    %s29 = sphi 0, %s31
    %s32 = sphi 0, %s29
    %s33 = sphi 0, %s32
    %s49 = sphi 0, %s33
    %s53 = sphi 0, %s53
    %s55 = sphi 0, %s53
    %s56 = sphi 0, %s55
    %s70 = sphi 0, %s56
    %s74 = sphi 0, %s74
    %s76 = sphi 0, %s74
    %s77 = sphi 0, %s76
    %s91 = sphi 0, %s77
    %s95 = sphi 0, %s95
    %s97 = sphi 0, %s95
    %s98 = sphi 0, %s97
    %s112 = sphi 0, %s98
    %s116 = sphi 0, %s116
    %s118 = sphi 0, %s116
    %s119 = sphi 0, %s118
    %s133 = sphi 0, %s119
    %s137 = sphi 0, %s137
    %s139 = sphi 0, %s137
    %s140 = sphi 0, %s139
    %s154 = sphi 0, %s140
    %s158 = sphi 0, %s158
    %s160 = sphi 0, %s158
    %s161 = sphi 0, %s160
    %s175 = sphi 0, %s161
    %s179 = sphi 0, %s179
    %s181 = sphi 0, %s179
    %s182 = sphi 0, %s181
    %s196 = sphi 0, %s182
    %s200 = sphi 0, %s200
    %s202 = sphi 0, %s200
    %s203 = sphi 0, %s202
    %s217 = sphi 0, %s203
    %s221 = sphi 0, %s221
    %s223 = sphi 0, %s221
    %s224 = sphi 0, %s223
    %s238 = sphi 0, %s224
    %s242 = sphi 0, %s242
    %s244 = sphi 0, %s242
    %s245 = sphi 0, %s244
    %s259 = sphi 0, %s245
    %s263 = sphi 0, %s263
    %s265 = sphi 0, %s263
    %s266 = sphi 0, %s265
    %s280 = sphi 0, %s266
    %s284 = sphi 0, %s284
    %s286 = sphi 0, %s284
    %s287 = sphi 0, %s286
    %s301 = sphi 0, %s287
    %s307 = sphi 0, %s309
    %s310 = sphi 0, %s307
    %s311 = sphi 0, %s310
    %s327 = sphi 0, %s311
  $region4: #{transformer_forward.5} parent=0 // loop_header_branch
    %22 = sbr.rel (%p20) target = $region8
  $region5: #{transformer_forward.5} parent=0 // loop_body
    %s24 = ssub.s32 %s19, 1
    %s25 = ssub.s32 %s19, 2
    %s26 = sadd.s32 %s19, 1
    %s27 = ssub.s32 %s19, %s26
    %p28 = scmp.eq.s32.totalorder %s27, 0
    %s30 = sadd.s32 %s29, 1
    %s31 = scalar_select %p28, %s29, %s30
    %p34 = pneg %p28
    %p35 = scmp.eq.s32.totalorder %s19, 1
    %p36 = por %p34, %p35
    %p37 = scmp.ne.s32.totalorder %s29, %s32
    %p38 = scmp.eq.s32.totalorder %s19, 0
    %p39 = por %p37, %p38
    %p40 = scmp.ne.s32.totalorder %s29, %s32
    %p41 = scmp.eq.s32.totalorder %s24, 1
    %p42 = por %p40, %p41
    %p43 = scmp.ne.s32.totalorder %s32, %s33
    %p44 = scmp.eq.s32.totalorder %s24, 0
    %p45 = por %p43, %p44
    %p46 = scmp.ne.s32.totalorder %s32, %s33
    %p47 = scmp.eq.s32.totalorder %s25, 1
    %p48 = por %p46, %p47
    %p50 = scmp.ne.s32.totalorder %s33, %s49
    %p51 = scmp.eq.s32.totalorder %s25, 0
    %p52 = por %p50, %p51
    %s54 = sadd.s32 %s53, 1
    %p57 = scmp.eq.s32.totalorder %s19, 1
    %p58 = scmp.ne.s32.totalorder %s53, %s55
    %p59 = scmp.eq.s32.totalorder %s19, 0
    %p60 = por %p58, %p59
    %p61 = scmp.ne.s32.totalorder %s53, %s55
    %p62 = scmp.eq.s32.totalorder %s24, 1
    %p63 = por %p61, %p62
    %p64 = scmp.ne.s32.totalorder %s55, %s56
    %p65 = scmp.eq.s32.totalorder %s24, 0
    %p66 = por %p64, %p65
    %p67 = scmp.ne.s32.totalorder %s55, %s56
    %p68 = scmp.eq.s32.totalorder %s25, 1
    %p69 = por %p67, %p68
    %p71 = scmp.ne.s32.totalorder %s56, %s70
    %p72 = scmp.eq.s32.totalorder %s25, 0
    %p73 = por %p71, %p72
    %s75 = sadd.s32 %s74, 1
    %p78 = scmp.eq.s32.totalorder %s19, 1
    %p79 = scmp.ne.s32.totalorder %s74, %s76
    %p80 = scmp.eq.s32.totalorder %s19, 0
    %p81 = por %p79, %p80
    %p82 = scmp.ne.s32.totalorder %s74, %s76
    %p83 = scmp.eq.s32.totalorder %s24, 1
    %p84 = por %p82, %p83
    %p85 = scmp.ne.s32.totalorder %s76, %s77
    %p86 = scmp.eq.s32.totalorder %s24, 0
    %p87 = por %p85, %p86
    %p88 = scmp.ne.s32.totalorder %s76, %s77
    %p89 = scmp.eq.s32.totalorder %s25, 1
    %p90 = por %p88, %p89
    %p92 = scmp.ne.s32.totalorder %s77, %s91
    %p93 = scmp.eq.s32.totalorder %s25, 0
    %p94 = por %p92, %p93
    %s96 = sadd.s32 %s95, 1
    %p99 = scmp.eq.s32.totalorder %s19, 1
    %p100 = scmp.ne.s32.totalorder %s95, %s97
    %p101 = scmp.eq.s32.totalorder %s19, 0
    %p102 = por %p100, %p101
    %p103 = scmp.ne.s32.totalorder %s95, %s97
    %p104 = scmp.eq.s32.totalorder %s24, 1
    %p105 = por %p103, %p104
    %p106 = scmp.ne.s32.totalorder %s97, %s98
    %p107 = scmp.eq.s32.totalorder %s24, 0
    %p108 = por %p106, %p107
    %p109 = scmp.ne.s32.totalorder %s97, %s98
    %p110 = scmp.eq.s32.totalorder %s25, 1
    %p111 = por %p109, %p110
    %p113 = scmp.ne.s32.totalorder %s98, %s112
    %p114 = scmp.eq.s32.totalorder %s25, 0
    %p115 = por %p113, %p114
    %s117 = sadd.s32 %s116, 1
    %p120 = scmp.eq.s32.totalorder %s19, 1
    %p121 = scmp.ne.s32.totalorder %s116, %s118
    %p122 = scmp.eq.s32.totalorder %s19, 0
    %p123 = por %p121, %p122
    %p124 = scmp.ne.s32.totalorder %s116, %s118
    %p125 = scmp.eq.s32.totalorder %s24, 1
    %p126 = por %p124, %p125
    %p127 = scmp.ne.s32.totalorder %s118, %s119
    %p128 = scmp.eq.s32.totalorder %s24, 0
    %p129 = por %p127, %p128
    %p130 = scmp.ne.s32.totalorder %s118, %s119
    %p131 = scmp.eq.s32.totalorder %s25, 1
    %p132 = por %p130, %p131
    %p134 = scmp.ne.s32.totalorder %s119, %s133
    %p135 = scmp.eq.s32.totalorder %s25, 0
    %p136 = por %p134, %p135
    %s138 = sadd.s32 %s137, 1
    %p141 = scmp.eq.s32.totalorder %s19, 1
    %p142 = scmp.ne.s32.totalorder %s137, %s139
    %p143 = scmp.eq.s32.totalorder %s19, 0
    %p144 = por %p142, %p143
    %p145 = scmp.ne.s32.totalorder %s137, %s139
    %p146 = scmp.eq.s32.totalorder %s24, 1
    %p147 = por %p145, %p146
    %p148 = scmp.ne.s32.totalorder %s139, %s140
    %p149 = scmp.eq.s32.totalorder %s24, 0
    %p150 = por %p148, %p149
    %p151 = scmp.ne.s32.totalorder %s139, %s140
    %p152 = scmp.eq.s32.totalorder %s25, 1
    %p153 = por %p151, %p152
    %p155 = scmp.ne.s32.totalorder %s140, %s154
    %p156 = scmp.eq.s32.totalorder %s25, 0
    %p157 = por %p155, %p156
    %s159 = sadd.s32 %s158, 1
    %p162 = scmp.eq.s32.totalorder %s19, 1
    %p163 = scmp.ne.s32.totalorder %s158, %s160
    %p164 = scmp.eq.s32.totalorder %s19, 0
    %p165 = por %p163, %p164
    %p166 = scmp.ne.s32.totalorder %s158, %s160
    %p167 = scmp.eq.s32.totalorder %s24, 1
    %p168 = por %p166, %p167
    %p169 = scmp.ne.s32.totalorder %s160, %s161
    %p170 = scmp.eq.s32.totalorder %s24, 0
    %p171 = por %p169, %p170
    %p172 = scmp.ne.s32.totalorder %s160, %s161
    %p173 = scmp.eq.s32.totalorder %s25, 1
    %p174 = por %p172, %p173
    %p176 = scmp.ne.s32.totalorder %s161, %s175
    %p177 = scmp.eq.s32.totalorder %s25, 0
    %p178 = por %p176, %p177
    %s180 = sadd.s32 %s179, 1
    %p183 = scmp.eq.s32.totalorder %s19, 1
    %p184 = scmp.ne.s32.totalorder %s179, %s181
    %p185 = scmp.eq.s32.totalorder %s19, 0
    %p186 = por %p184, %p185
    %p187 = scmp.ne.s32.totalorder %s179, %s181
    %p188 = scmp.eq.s32.totalorder %s24, 1
    %p189 = por %p187, %p188
    %p190 = scmp.ne.s32.totalorder %s181, %s182
    %p191 = scmp.eq.s32.totalorder %s24, 0
    %p192 = por %p190, %p191
    %p193 = scmp.ne.s32.totalorder %s181, %s182
    %p194 = scmp.eq.s32.totalorder %s25, 1
    %p195 = por %p193, %p194
    %p197 = scmp.ne.s32.totalorder %s182, %s196
    %p198 = scmp.eq.s32.totalorder %s25, 0
    %p199 = por %p197, %p198
    %s201 = sadd.s32 %s200, 1
    %p204 = scmp.eq.s32.totalorder %s19, 1
    %p205 = scmp.ne.s32.totalorder %s200, %s202
    %p206 = scmp.eq.s32.totalorder %s19, 0
    %p207 = por %p205, %p206
    %p208 = scmp.ne.s32.totalorder %s200, %s202
    %p209 = scmp.eq.s32.totalorder %s24, 1
    %p210 = por %p208, %p209
    %p211 = scmp.ne.s32.totalorder %s202, %s203
    %p212 = scmp.eq.s32.totalorder %s24, 0
    %p213 = por %p211, %p212
    %p214 = scmp.ne.s32.totalorder %s202, %s203
    %p215 = scmp.eq.s32.totalorder %s25, 1
    %p216 = por %p214, %p215
    %p218 = scmp.ne.s32.totalorder %s203, %s217
    %p219 = scmp.eq.s32.totalorder %s25, 0
    %p220 = por %p218, %p219
    %s222 = sadd.s32 %s221, 1
    %p225 = scmp.eq.s32.totalorder %s19, 1
    %p226 = scmp.ne.s32.totalorder %s221, %s223
    %p227 = scmp.eq.s32.totalorder %s19, 0
    %p228 = por %p226, %p227
    %p229 = scmp.ne.s32.totalorder %s221, %s223
    %p230 = scmp.eq.s32.totalorder %s24, 1
    %p231 = por %p229, %p230
    %p232 = scmp.ne.s32.totalorder %s223, %s224
    %p233 = scmp.eq.s32.totalorder %s24, 0
    %p234 = por %p232, %p233
    %p235 = scmp.ne.s32.totalorder %s223, %s224
    %p236 = scmp.eq.s32.totalorder %s25, 1
    %p237 = por %p235, %p236
    %p239 = scmp.ne.s32.totalorder %s224, %s238
    %p240 = scmp.eq.s32.totalorder %s25, 0
    %p241 = por %p239, %p240
    %s243 = sadd.s32 %s242, 1
    %p246 = scmp.eq.s32.totalorder %s19, 1
    %p247 = scmp.ne.s32.totalorder %s242, %s244
    %p248 = scmp.eq.s32.totalorder %s19, 0
    %p249 = por %p247, %p248
    %p250 = scmp.ne.s32.totalorder %s242, %s244
    %p251 = scmp.eq.s32.totalorder %s24, 1
    %p252 = por %p250, %p251
    %p253 = scmp.ne.s32.totalorder %s244, %s245
    %p254 = scmp.eq.s32.totalorder %s24, 0
    %p255 = por %p253, %p254
    %p256 = scmp.ne.s32.totalorder %s244, %s245
    %p257 = scmp.eq.s32.totalorder %s25, 1
    %p258 = por %p256, %p257
    %p260 = scmp.ne.s32.totalorder %s245, %s259
    %p261 = scmp.eq.s32.totalorder %s25, 0
    %p262 = por %p260, %p261
    %s264 = sadd.s32 %s263, 1
    %p267 = scmp.eq.s32.totalorder %s19, 1
    %p268 = scmp.ne.s32.totalorder %s263, %s265
    %p269 = scmp.eq.s32.totalorder %s19, 0
    %p270 = por %p268, %p269
    %p271 = scmp.ne.s32.totalorder %s263, %s265
    %p272 = scmp.eq.s32.totalorder %s24, 1
    %p273 = por %p271, %p272
    %p274 = scmp.ne.s32.totalorder %s265, %s266
    %p275 = scmp.eq.s32.totalorder %s24, 0
    %p276 = por %p274, %p275
    %p277 = scmp.ne.s32.totalorder %s265, %s266
    %p278 = scmp.eq.s32.totalorder %s25, 1
    %p279 = por %p277, %p278
    %p281 = scmp.ne.s32.totalorder %s266, %s280
    %p282 = scmp.eq.s32.totalorder %s25, 0
    %p283 = por %p281, %p282
    %s285 = sadd.s32 %s284, 1
    %p288 = scmp.eq.s32.totalorder %s19, 1
    %p289 = scmp.ne.s32.totalorder %s284, %s286
    %p290 = scmp.eq.s32.totalorder %s19, 0
    %p291 = por %p289, %p290
    %p292 = scmp.ne.s32.totalorder %s284, %s286
    %p293 = scmp.eq.s32.totalorder %s24, 1
    %p294 = por %p292, %p293
    %p295 = scmp.ne.s32.totalorder %s286, %s287
    %p296 = scmp.eq.s32.totalorder %s24, 0
    %p297 = por %p295, %p296
    %p298 = scmp.ne.s32.totalorder %s286, %s287
    %p299 = scmp.eq.s32.totalorder %s25, 1
    %p300 = por %p298, %p299
    %p302 = scmp.ne.s32.totalorder %s287, %s301
    %p303 = scmp.eq.s32.totalorder %s25, 0
    %p304 = por %p302, %p303
    %s305 = ssub.s32 %s19, %s26
    %p306 = scmp.eq.s32.totalorder %s305, 0
    %s308 = sadd.s32 %s307, 1
    %s309 = scalar_select %p306, %s307, %s308
    %p312 = pneg %p306
    %p313 = scmp.eq.s32.totalorder %s19, 1
    %p314 = por %p312, %p313
    %p315 = scmp.ne.s32.totalorder %s307, %s310
    %p316 = scmp.eq.s32.totalorder %s19, 0
    %p317 = por %p315, %p316
    %p318 = scmp.ne.s32.totalorder %s307, %s310
    %p319 = scmp.eq.s32.totalorder %s24, 1
    %p320 = por %p318, %p319
    %p321 = scmp.ne.s32.totalorder %s310, %s311
    %p322 = scmp.eq.s32.totalorder %s24, 0
    %p323 = por %p321, %p322
    %p324 = scmp.ne.s32.totalorder %s310, %s311
    %p325 = scmp.eq.s32.totalorder %s25, 1
    %p326 = por %p324, %p325
    %p328 = scmp.ne.s32.totalorder %s311, %s327
    %p329 = scmp.eq.s32.totalorder %s25, 0
    %p330 = por %p328, %p329
    %p331 = scmp.le.s32.totalorder 1, %s19
    %p332 = scmp.lt.s32.totalorder %s19, 3
    %p333 = pnand %p331, %p332
    %p334 = pneg %p333
    // Predicated region
    $region9: #{transformer_forward.5} parent=5 // pred_check
      _
    $region10: #{transformer_forward.5} parent=5 // pred_check_branch
      %336 = sbr.rel (%p333) target = $region12
    $region11: #{transformer_forward.5} parent=5 // pred_region
      %s337 = ssub.s32 %s19, 1
      // Predicated region
      $region13: #{transformer_forward.5} parent=11 // pred_check
        %p338 = pneg %p66
      $region14: #{transformer_forward.5} parent=11 // pred_check_branch
        %340 = sbr.rel (%p338) target = $region16
      $region15: #{transformer_forward.5} parent=11 // pred_region
        _
      $region16: #{transformer_forward.5} parent=11 // pred_fallthru
        _
      // Predicated region
      $region17: #{transformer_forward.5} parent=11 // pred_check
        %p341 = pneg %p87
      $region18: #{transformer_forward.5} parent=11 // pred_check_branch
        %343 = sbr.rel (%p341) target = $region20
      $region19: #{transformer_forward.5} parent=11 // pred_region
        _
      $region20: #{transformer_forward.5} parent=11 // pred_fallthru
        _
      // Predicated region
      $region21: #{transformer_forward.5} parent=11 // pred_check
        %p344 = pneg %p108
      $region22: #{transformer_forward.5} parent=11 // pred_check_branch
        %346 = sbr.rel (%p344) target = $region24
      $region23: #{transformer_forward.5} parent=11 // pred_region
        _
      $region24: #{transformer_forward.5} parent=11 // pred_fallthru
        _
      // Predicated region
      $region25: #{transformer_forward.5} parent=11 // pred_check
        %p347 = pneg %p129
      $region26: #{transformer_forward.5} parent=11 // pred_check_branch
        %349 = sbr.rel (%p347) target = $region28
      $region27: #{transformer_forward.5} parent=11 // pred_region
        _
      $region28: #{transformer_forward.5} parent=11 // pred_fallthru
        _
      // Predicated region
      $region29: #{transformer_forward.5} parent=11 // pred_check
        %p350 = pneg %p150
      $region30: #{transformer_forward.5} parent=11 // pred_check_branch
        %352 = sbr.rel (%p350) target = $region32
      $region31: #{transformer_forward.5} parent=11 // pred_region
        _
      $region32: #{transformer_forward.5} parent=11 // pred_fallthru
        _
      // Predicated region
      $region33: #{transformer_forward.5} parent=11 // pred_check
        %p353 = pneg %p171
      $region34: #{transformer_forward.5} parent=11 // pred_check_branch
        %355 = sbr.rel (%p353) target = $region36
      $region35: #{transformer_forward.5} parent=11 // pred_region
        _
      $region36: #{transformer_forward.5} parent=11 // pred_fallthru
        _
      // Predicated region
      $region37: #{transformer_forward.5} parent=11 // pred_check
        %p356 = pneg %p192
      $region38: #{transformer_forward.5} parent=11 // pred_check_branch
        %358 = sbr.rel (%p356) target = $region40
      $region39: #{transformer_forward.5} parent=11 // pred_region
        _
      $region40: #{transformer_forward.5} parent=11 // pred_fallthru
        _
      // Predicated region
      $region41: #{transformer_forward.5} parent=11 // pred_check
        %p359 = pneg %p213
      $region42: #{transformer_forward.5} parent=11 // pred_check_branch
        %361 = sbr.rel (%p359) target = $region44
      $region43: #{transformer_forward.5} parent=11 // pred_region
        _
      $region44: #{transformer_forward.5} parent=11 // pred_fallthru
        _
      // Predicated region
      $region45: #{transformer_forward.5} parent=11 // pred_check
        %p362 = pneg %p234
      $region46: #{transformer_forward.5} parent=11 // pred_check_branch
        %364 = sbr.rel (%p362) target = $region48
      $region47: #{transformer_forward.5} parent=11 // pred_region
        _
      $region48: #{transformer_forward.5} parent=11 // pred_fallthru
        _
      // Predicated region
      $region49: #{transformer_forward.5} parent=11 // pred_check
        %p365 = pneg %p255
      $region50: #{transformer_forward.5} parent=11 // pred_check_branch
        %367 = sbr.rel (%p365) target = $region52
      $region51: #{transformer_forward.5} parent=11 // pred_region
        _
      $region52: #{transformer_forward.5} parent=11 // pred_fallthru
        _
      // Predicated region
      $region53: #{transformer_forward.5} parent=11 // pred_check
        %p368 = pneg %p276
      $region54: #{transformer_forward.5} parent=11 // pred_check_branch
        %370 = sbr.rel (%p368) target = $region56
      $region55: #{transformer_forward.5} parent=11 // pred_region
        _
      $region56: #{transformer_forward.5} parent=11 // pred_fallthru
        _
      // Predicated region
      $region57: #{transformer_forward.5} parent=11 // pred_check
        %p371 = pneg %p297
      $region58: #{transformer_forward.5} parent=11 // pred_check_branch
        %373 = sbr.rel (%p371) target = $region60
      $region59: #{transformer_forward.5} parent=11 // pred_region
        _
      $region60: #{transformer_forward.5} parent=11 // pred_fallthru
        _
    $region12: #{transformer_forward.5} parent=5 // pred_fallthru
      _
    %p374 = scmp.lt.s32.totalorder %s19, 2
    // Predicated region
    $region61: #{transformer_forward.5} parent=5 // pred_check
      %p375 = pneg %p374
    $region62: #{transformer_forward.5} parent=5 // pred_check_branch
      %377 = sbr.rel (%p375) target = $region64
    $region63: #{transformer_forward.5} parent=5 // pred_region
      // Predicated region
      $region65: #{transformer_forward.5} parent=63 // pred_check
        %p378 = pneg %p39
      $region66: #{transformer_forward.5} parent=63 // pred_check_branch
        %380 = sbr.rel (%p378) target = $region68
      $region67: #{transformer_forward.5} parent=63 // pred_region
        %p381 = scmp.lt.s32.totalorder %s19, 1
        %s382 = scalar_select %p381, %s19, 1
        %s383 = smul.addr %s382, 8
        %s384 = scalar_lea.vmem %s0, %s383
      $region68: #{transformer_forward.5} parent=63 // pred_fallthru
        _
    $region64: #{transformer_forward.5} parent=5 // pred_fallthru
      _
    %p385 = scmp.le.s32.totalorder 1, %s19
    %p386 = scmp.lt.s32.totalorder %s19, 3
    %p387 = pnand %p385, %p386
    %p388 = pneg %p387
    // Predicated region
    $region69: #{transformer_forward.5} parent=5 // pred_check
      _
    $region70: #{transformer_forward.5} parent=5 // pred_check_branch
      %390 = sbr.rel (%p387) target = $region72
    $region71: #{transformer_forward.5} parent=5 // pred_region
      %s391 = ssub.s32 %s19, 1
      %p392 = scmp.lt.s32.totalorder %s24, 1
      %s393 = scalar_select %p392, %s24, 1
      %s394 = smul.addr %s393, 8
      %s395 = scalar_lea.vmem %s0, %s394
      %p396 = pneg %p45
      %p397 = pneg %p42
      %p398 = pneg %p66
      %p399 = pneg %p63
      %p400 = pneg %p87
      %p401 = pneg %p84
      %p402 = pneg %p108
      %p403 = pneg %p105
      %p404 = pneg %p129
      %p405 = pneg %p126
      %p406 = pneg %p150
      %p407 = pneg %p147
      %p408 = pneg %p171
      %p409 = pneg %p168
      %p410 = pneg %p192
      %p411 = pneg %p189
      %p412 = pneg %p213
      %p413 = pneg %p210
      %p414 = pneg %p234
      %p415 = pneg %p231
      %p416 = pneg %p255
      %p417 = pneg %p252
      %p418 = pneg %p276
      %p419 = pneg %p273
      %p420 = pneg %p297
      %p421 = pneg %p294
      %p422 = pneg %p323
      %p423 = pneg %p320
      %p424 = scmp.lt.s32.totalorder %s24, 1
      %s425 = scalar_select %p424, %s24, 1
      %s426 = smul.addr %s425, 8
      %s427 = scalar_lea.vmem %s13, %s426
      %p428 = scmp.lt.s32.totalorder %s24, 1
      %s429 = scalar_select %p428, %s24, 1
      %s430 = smul.addr %s429, 8
      %s431 = scalar_lea.vmem %s0, %s430
      %p432 = scmp.lt.s32.totalorder %s24, 1
      %s433 = scalar_select %p432, %s24, 1
      %s434 = smul.addr %s433, 8
      %s435 = scalar_lea.vmem %s13, %s434
      %v436 = vld [vmem:[%s431] sm:$0xff]
      %v437 = vld [vmem:[%s1] sm:$0xff]
      %v438 = vld [vmem:[%s1 + $0x8] sm:$0xff]
      %v439 = vld [vmem:[%s1 + $0x10] sm:$0xff]
      %v440 = vld [vmem:[%s1 + $0x18] sm:$0xff]
      %v441 = vld [vmem:[%s2] sm:$0x1]
      %v442 = vld [vmem:[%s3] sm:$0xff]
      %v443 = vld [vmem:[%s3 + $0x8] sm:$0xff]
      %v444 = vld [vmem:[%s3 + $0x10] sm:$0xff]
      %v445 = vld [vmem:[%s3 + $0x18] sm:$0xff]
      %v446 = vld [vmem:[%s4] sm:$0x1]
      %v448 = vlaneseq
      %v449 = vshrl.u32 %v448, 7
      %v450 = vsub.s32 0, %v449
      %v451 = vrot.slane %v441, %v450
      %vm453 = vcmask 261120
      %v455 = vsel %vm453, %v436, 0
      %457 = vmatprep.subr.mxu0 0.0
      %458 = vmatpush1.msra.mxu0 %v437
      %459 = vmatprep.subr.mxu0 0.0
      %460 = vmatpush1.msra.mxu0 %v438
      %461 = vmatprep.subr.mxu0 0.0
      %462 = vmatpush1.msra.mxu0 %v439
      %463 = vmatprep.subr.mxu0 0.0
      %464 = vmatpush1.msra.mxu0 %v440
      %465 = vmatprep.subr.mxu0 0.0
      %466 = vmatpush1.msra.mxu0 0.0
      %467 = vmatprep.subr.mxu0 0.0
      %468 = vmatpush1.msra.mxu0 0.0
      %469 = vmatprep.subr.mxu0 0.0
      %470 = vmatpush1.msra.mxu0 0.0
      %471 = vmatprep.subr.mxu0 0.0
      %472 = vmatpush1.msra.mxu0 0.0
      %473 = vmatprep.subr.mxu0 0.0
      %474 = vmatpush1.msra.mxu0 0.0
      %475 = vmatprep.subr.mxu0 0.0
      %476 = vmatpush1.msra.mxu0 0.0
      %477 = vmatprep.subr.mxu0 0.0
      %478 = vmatpush1.msra.mxu0 0.0
      %479 = vmatprep.subr.mxu0 0.0
      %480 = vmatpush1.msra.mxu0 0.0
      %481 = vmatprep.subr.mxu0 0.0
      %482 = vmatpush1.msra.mxu0 0.0
      %483 = vmatprep.subr.mxu0 0.0
      %484 = vmatpush1.msra.mxu0 0.0
      %485 = vmatprep.subr.mxu0 0.0
      %486 = vmatpush1.msra.mxu0 0.0
      %487 = vmatprep.subr.mxu0 0.0
      %488 = vmatpush1.msra.mxu0 0.0
      %489 = vmatprep.subr.mxu0 0.0
      %490 = vmatpush1.msra.mxu0 0.0
      %491 = vmatprep.subr.mxu0 0.0
      %492 = vmatpush1.msra.mxu0 0.0
      %493 = vmatprep.subr.mxu0 0.0
      %494 = vmatpush1.msra.mxu0 0.0
      %495 = vmatprep.subr.mxu0 0.0
      %496 = vmatpush1.msra.mxu0 0.0
      %497 = vmatprep.subr.mxu0 0.0
      %498 = vmatpush1.msra.mxu0 0.0
      %499 = vmatprep.subr.mxu0 0.0
      %500 = vmatpush1.msra.mxu0 0.0
      %501 = vmatprep.subr.mxu0 0.0
      %502 = vmatpush1.msra.mxu0 0.0
      %503 = vmatprep.subr.mxu0 0.0
      %504 = vmatpush1.msra.mxu0 0.0
      %505 = vmatprep.subr.mxu0 0.0
      %506 = vmatpush1.msra.mxu0 0.0
      %507 = vmatprep.subr.mxu0 0.0
      %508 = vmatpush1.msra.mxu0 0.0
      %509 = vmatprep.subr.mxu0 0.0
      %510 = vmatpush1.msra.mxu0 0.0
      %511 = vmatprep.subr.mxu0 0.0
      %512 = vmatpush1.msra.mxu0 0.0
      %513 = vmatprep.subr.mxu0 0.0
      %514 = vmatpush1.msra.mxu0 0.0
      %515 = vmatprep.subr.mxu0 0.0
      %516 = vmatpush1.msra.mxu0 0.0
      %517 = vmatprep.subr.mxu0 0.0
      %518 = vmatpush1.msra.mxu0 0.0
      %519 = vmatprep.subr.mxu0 0.0
      %520 = vmatpush1.msra.mxu0 0.0
      %521 = vmatprep.mubr.f32.mxu0 0.0
      %522 = vmatmul.mubr.f32.gmra.mrb[0].mxu0 %v455
      %v523 = vpop.f32.mrb[0].mxu0
      %v524 = vadd.f32 %v451, %v523
      %v525 = vpop.f32.mrb[0].mxu0
      %526 = vdwg.mxu0
      %v527 = vsel %vm453, %v524, 0.0
      %v528 = vrot.slane %v527, 4
      %v529 = vadd.f32 %v527, %v528
      %v530 = vrot.slane %v529, 2
      %v531 = vadd.f32 %v529, %v530
      %v532 = vrot.slane %v531, 1
      %v533 = vadd.f32 %v531, %v532
      %v535 = vsel %vm453, %v533, 0
      %537 = vmatprep.subr.mxu0 0.0
      %538 = vmatpush1.msra.mxu0 %v442
      %539 = vmatprep.subr.mxu0 0.0
      %540 = vmatpush1.msra.mxu0 %v443
      %541 = vmatprep.subr.mxu0 0.0
      %542 = vmatpush1.msra.mxu0 %v444
      %543 = vmatprep.subr.mxu0 0.0
      %544 = vmatpush1.msra.mxu0 %v445
      %545 = vmatprep.subr.mxu0 0.0
      %546 = vmatpush1.msra.mxu0 0.0
      %547 = vmatprep.subr.mxu0 0.0
      %548 = vmatpush1.msra.mxu0 0.0
      %549 = vmatprep.subr.mxu0 0.0
      %550 = vmatpush1.msra.mxu0 0.0
      %551 = vmatprep.subr.mxu0 0.0
      %552 = vmatpush1.msra.mxu0 0.0
      %553 = vmatprep.subr.mxu0 0.0
      %554 = vmatpush1.msra.mxu0 0.0
      %555 = vmatprep.subr.mxu0 0.0
      %556 = vmatpush1.msra.mxu0 0.0
      %557 = vmatprep.subr.mxu0 0.0
      %558 = vmatpush1.msra.mxu0 0.0
      %559 = vmatprep.subr.mxu0 0.0
      %560 = vmatpush1.msra.mxu0 0.0
      %561 = vmatprep.subr.mxu0 0.0
      %562 = vmatpush1.msra.mxu0 0.0
      %563 = vmatprep.subr.mxu0 0.0
      %564 = vmatpush1.msra.mxu0 0.0
      %565 = vmatprep.subr.mxu0 0.0
      %566 = vmatpush1.msra.mxu0 0.0
      %567 = vmatprep.subr.mxu0 0.0
      %568 = vmatpush1.msra.mxu0 0.0
      %569 = vmatprep.subr.mxu0 0.0
      %570 = vmatpush1.msra.mxu0 0.0
      %571 = vmatprep.subr.mxu0 0.0
      %572 = vmatpush1.msra.mxu0 0.0
      %573 = vmatprep.subr.mxu0 0.0
      %574 = vmatpush1.msra.mxu0 0.0
      %575 = vmatprep.subr.mxu0 0.0
      %576 = vmatpush1.msra.mxu0 0.0
      %577 = vmatprep.subr.mxu0 0.0
      %578 = vmatpush1.msra.mxu0 0.0
      %579 = vmatprep.subr.mxu0 0.0
      %580 = vmatpush1.msra.mxu0 0.0
      %581 = vmatprep.subr.mxu0 0.0
      %582 = vmatpush1.msra.mxu0 0.0
      %583 = vmatprep.subr.mxu0 0.0
      %584 = vmatpush1.msra.mxu0 0.0
      %585 = vmatprep.subr.mxu0 0.0
      %586 = vmatpush1.msra.mxu0 0.0
      %587 = vmatprep.subr.mxu0 0.0
      %588 = vmatpush1.msra.mxu0 0.0
      %589 = vmatprep.subr.mxu0 0.0
      %590 = vmatpush1.msra.mxu0 0.0
      %591 = vmatprep.subr.mxu0 0.0
      %592 = vmatpush1.msra.mxu0 0.0
      %593 = vmatprep.subr.mxu0 0.0
      %594 = vmatpush1.msra.mxu0 0.0
      %595 = vmatprep.subr.mxu0 0.0
      %596 = vmatpush1.msra.mxu0 0.0
      %597 = vmatprep.subr.mxu0 0.0
      %598 = vmatpush1.msra.mxu0 0.0
      %599 = vmatprep.subr.mxu0 0.0
      %600 = vmatpush1.msra.mxu0 0.0
      %601 = vmatprep.mubr.f32.mxu0 0.0
      %602 = vmatmul.mubr.f32.gmra.mrb[0].mxu0 %v535
      %v603 = vpop.f32.mrb[0].mxu0
      %v604 = vadd.f32 %v446, %v603
      %v605 = vpop.f32.mrb[0].mxu0
      %606 = vdwg.mxu0
      %v607 = vlaneseq
      %v608 = vshrl.u32 %v607, 7
      %v609 = vsub.s32 0, %v608
      %v610 = vrot.slane %v604, %v609
      %v611 = vadd.f32 %v436, %v610
      %v612 = vld [vmem:[%s5] sm:$0x1]
      %v613 = vld [vmem:[%s6] sm:$0x1]
      %v614 = vsel %vm453, %v611, 0.0
      %615 = vadd.xlane.f32.xlu0 %v614
      %v616 = vpop.xlane.xlu0 %615
      %v617 = vrcp.pop 32.0
      %v618 = vmul.f32 %v616, %v617
      %v619 = vsub.f32 %v611, %v618
      %v620 = vmul.f32 %v619, %v619
      %v621 = vsel %vm453, %v620, 0.0
      %622 = vadd.xlane.f32.xlu0 %v621
      %v623 = vpop.xlane.xlu0 %622
      %v624 = vmul.f32 %v623, %v617
      %v625 = vadd.f32 %v624, 1e-05
      %v626 = vrsqrt.pop %v625
      %v627 = vmul.f32 %v619, %v626
      %v629 = vlaneseq
      %v630 = vshrl.u32 %v629, 7
      %v631 = vsub.s32 0, %v630
      %v632 = vrot.slane %v612, %v631
      %v634 = vmul.f32 %v627, %v632
      %v636 = vlaneseq
      %v637 = vshrl.u32 %v636, 7
      %v638 = vsub.s32 0, %v637
      %v639 = vrot.slane %v613, %v638
      %v641 = vadd.f32 %v634, %v639
      %v642 = vld [vmem:[%s7] sm:$0xff]
      %v643 = vld [vmem:[%s7 + $0x8] sm:$0xff]
      %v644 = vld [vmem:[%s7 + $0x10] sm:$0xff]
      %v645 = vld [vmem:[%s7 + $0x18] sm:$0xff]
      %v646 = vld [vmem:[%s8] sm:$0x1]
      %v648 = vlaneseq
      %v649 = vshrl.u32 %v648, 7
      %v650 = vsub.s32 0, %v649
      %v651 = vrot.slane %v646, %v650
      %v654 = vsel %vm453, %v641, 0
      %656 = vmatprep.subr.mxu0 0.0
      %657 = vmatpush1.msra.mxu0 %v642
      %658 = vmatprep.subr.mxu0 0.0
      %659 = vmatpush1.msra.mxu0 %v643
      %660 = vmatprep.subr.mxu0 0.0
      %661 = vmatpush1.msra.mxu0 %v644
      %662 = vmatprep.subr.mxu0 0.0
      %663 = vmatpush1.msra.mxu0 %v645
      %664 = vmatprep.subr.mxu0 0.0
      %665 = vmatpush1.msra.mxu0 0.0
      %666 = vmatprep.subr.mxu0 0.0
      %667 = vmatpush1.msra.mxu0 0.0
      %668 = vmatprep.subr.mxu0 0.0
      %669 = vmatpush1.msra.mxu0 0.0
      %670 = vmatprep.subr.mxu0 0.0
      %671 = vmatpush1.msra.mxu0 0.0
      %672 = vmatprep.subr.mxu0 0.0
      %673 = vmatpush1.msra.mxu0 0.0
      %674 = vmatprep.subr.mxu0 0.0
      %675 = vmatpush1.msra.mxu0 0.0
      %676 = vmatprep.subr.mxu0 0.0
      %677 = vmatpush1.msra.mxu0 0.0
      %678 = vmatprep.subr.mxu0 0.0
      %679 = vmatpush1.msra.mxu0 0.0
      %680 = vmatprep.subr.mxu0 0.0
      %681 = vmatpush1.msra.mxu0 0.0
      %682 = vmatprep.subr.mxu0 0.0
      %683 = vmatpush1.msra.mxu0 0.0
      %684 = vmatprep.subr.mxu0 0.0
      %685 = vmatpush1.msra.mxu0 0.0
      %686 = vmatprep.subr.mxu0 0.0
      %687 = vmatpush1.msra.mxu0 0.0
      %688 = vmatprep.subr.mxu0 0.0
      %689 = vmatpush1.msra.mxu0 0.0
      %690 = vmatprep.subr.mxu0 0.0
      %691 = vmatpush1.msra.mxu0 0.0
      %692 = vmatprep.subr.mxu0 0.0
      %693 = vmatpush1.msra.mxu0 0.0
      %694 = vmatprep.subr.mxu0 0.0
      %695 = vmatpush1.msra.mxu0 0.0
      %696 = vmatprep.subr.mxu0 0.0
      %697 = vmatpush1.msra.mxu0 0.0
      %698 = vmatprep.subr.mxu0 0.0
      %699 = vmatpush1.msra.mxu0 0.0
      %700 = vmatprep.subr.mxu0 0.0
      %701 = vmatpush1.msra.mxu0 0.0
      %702 = vmatprep.subr.mxu0 0.0
      %703 = vmatpush1.msra.mxu0 0.0
      %704 = vmatprep.subr.mxu0 0.0
      %705 = vmatpush1.msra.mxu0 0.0
      %706 = vmatprep.subr.mxu0 0.0
      %707 = vmatpush1.msra.mxu0 0.0
      %708 = vmatprep.subr.mxu0 0.0
      %709 = vmatpush1.msra.mxu0 0.0
      %710 = vmatprep.subr.mxu0 0.0
      %711 = vmatpush1.msra.mxu0 0.0
      %712 = vmatprep.subr.mxu0 0.0
      %713 = vmatpush1.msra.mxu0 0.0
      %714 = vmatprep.subr.mxu0 0.0
      %715 = vmatpush1.msra.mxu0 0.0
      %716 = vmatprep.subr.mxu0 0.0
      %717 = vmatpush1.msra.mxu0 0.0
      %718 = vmatprep.subr.mxu0 0.0
      %719 = vmatpush1.msra.mxu0 0.0
      %720 = vmatprep.mubr.f32.mxu0 0.0
      %721 = vmatmul.mubr.f32.gmra.mrb[0].mxu0 %v654
      %v722 = vpop.f32.mrb[0].mxu0
      %v723 = vadd.f32 %v651, %v722
      %v724 = vpop.f32.mrb[0].mxu0
      %725 = vdwg.mxu0
      %v726 = vmax.f32 %v723, 0.0
      %v727 = vld [vmem:[%s9] sm:$0xff]
      %v728 = vld [vmem:[%s9 + $0x8] sm:$0xff]
      %v729 = vld [vmem:[%s9 + $0x10] sm:$0xff]
      %v730 = vld [vmem:[%s9 + $0x18] sm:$0xff]
      %v731 = vld [vmem:[%s9 + $0x20] sm:$0xff]
      %v732 = vld [vmem:[%s9 + $0x28] sm:$0xff]
      %v733 = vld [vmem:[%s9 + $0x30] sm:$0xff]
      %v734 = vld [vmem:[%s9 + $0x38] sm:$0xff]
      %v735 = vld [vmem:[%s10] sm:$0x1]
      %v737 = vlaneseq
      %v738 = vshrl.u32 %v737, 7
      %v739 = vsub.s32 0, %v738
      %v740 = vrot.slane %v735, %v739
      %vm742 = vcmask 523264
      %v744 = vsel %vm742, %v726, 0
      %746 = vmatprep.subr.mxu0 0.0
      %747 = vmatpush1.msra.mxu0 %v727
      %748 = vmatprep.subr.mxu0 0.0
      %749 = vmatpush1.msra.mxu0 %v728
      %750 = vmatprep.subr.mxu0 0.0
      %751 = vmatpush1.msra.mxu0 %v729
      %752 = vmatprep.subr.mxu0 0.0
      %753 = vmatpush1.msra.mxu0 %v730
      %754 = vmatprep.subr.mxu0 0.0
      %755 = vmatpush1.msra.mxu0 %v731
      %756 = vmatprep.subr.mxu0 0.0
      %757 = vmatpush1.msra.mxu0 %v732
      %758 = vmatprep.subr.mxu0 0.0
      %759 = vmatpush1.msra.mxu0 %v733
      %760 = vmatprep.subr.mxu0 0.0
      %761 = vmatpush1.msra.mxu0 %v734
      %762 = vmatprep.subr.mxu0 0.0
      %763 = vmatpush1.msra.mxu0 0.0
      %764 = vmatprep.subr.mxu0 0.0
      %765 = vmatpush1.msra.mxu0 0.0
      %766 = vmatprep.subr.mxu0 0.0
      %767 = vmatpush1.msra.mxu0 0.0
      %768 = vmatprep.subr.mxu0 0.0
      %769 = vmatpush1.msra.mxu0 0.0
      %770 = vmatprep.subr.mxu0 0.0
      %771 = vmatpush1.msra.mxu0 0.0
      %772 = vmatprep.subr.mxu0 0.0
      %773 = vmatpush1.msra.mxu0 0.0
      %774 = vmatprep.subr.mxu0 0.0
      %775 = vmatpush1.msra.mxu0 0.0
      %776 = vmatprep.subr.mxu0 0.0
      %777 = vmatpush1.msra.mxu0 0.0
      %778 = vmatprep.subr.mxu0 0.0
      %779 = vmatpush1.msra.mxu0 0.0
      %780 = vmatprep.subr.mxu0 0.0
      %781 = vmatpush1.msra.mxu0 0.0
      %782 = vmatprep.subr.mxu0 0.0
      %783 = vmatpush1.msra.mxu0 0.0
      %784 = vmatprep.subr.mxu0 0.0
      %785 = vmatpush1.msra.mxu0 0.0
      %786 = vmatprep.subr.mxu0 0.0
      %787 = vmatpush1.msra.mxu0 0.0
      %788 = vmatprep.subr.mxu0 0.0
      %789 = vmatpush1.msra.mxu0 0.0
      %790 = vmatprep.subr.mxu0 0.0
      %791 = vmatpush1.msra.mxu0 0.0
      %792 = vmatprep.subr.mxu0 0.0
      %793 = vmatpush1.msra.mxu0 0.0
      %794 = vmatprep.subr.mxu0 0.0
      %795 = vmatpush1.msra.mxu0 0.0
      %796 = vmatprep.subr.mxu0 0.0
      %797 = vmatpush1.msra.mxu0 0.0
      %798 = vmatprep.subr.mxu0 0.0
      %799 = vmatpush1.msra.mxu0 0.0
      %800 = vmatprep.subr.mxu0 0.0
      %801 = vmatpush1.msra.mxu0 0.0
      %802 = vmatprep.subr.mxu0 0.0
      %803 = vmatpush1.msra.mxu0 0.0
      %804 = vmatprep.subr.mxu0 0.0
      %805 = vmatpush1.msra.mxu0 0.0
      %806 = vmatprep.subr.mxu0 0.0
      %807 = vmatpush1.msra.mxu0 0.0
      %808 = vmatprep.subr.mxu0 0.0
      %809 = vmatpush1.msra.mxu0 0.0
      %810 = vmatprep.mubr.f32.mxu0 0.0
      %811 = vmatmul.mubr.f32.gmra.mrb[0].mxu0 %v744
      %v812 = vpop.f32.mrb[0].mxu0
      %v813 = vadd.f32 %v740, %v812
      %v814 = vpop.f32.mrb[0].mxu0
      %815 = vdwg.mxu0
      %v816 = vadd.f32 %v641, %v813
      %v817 = vld [vmem:[%s11] sm:$0x1]
      %v818 = vld [vmem:[%s12] sm:$0x1]
      %v819 = vsel %vm453, %v816, 0.0
      %820 = vadd.xlane.f32.xlu0 %v819
      %v821 = vpop.xlane.xlu0 %820
      %v822 = vmul.f32 %v821, %v617
      %v823 = vsub.f32 %v816, %v822
      %v824 = vmul.f32 %v823, %v823
      %v825 = vsel %vm453, %v824, 0.0
      %826 = vadd.xlane.f32.xlu0 %v825
      %v827 = vpop.xlane.xlu0 %826
      %v828 = vmul.f32 %v827, %v617
      %v829 = vadd.f32 %v828, 1e-05
      %v830 = vrsqrt.pop %v829
      %v831 = vmul.f32 %v823, %v830
      %v833 = vlaneseq
      %v834 = vshrl.u32 %v833, 7
      %v835 = vsub.s32 0, %v834
      %v836 = vrot.slane %v817, %v835
      %v838 = vmul.f32 %v831, %v836
      %v840 = vlaneseq
      %v841 = vshrl.u32 %v840, 7
      %v842 = vsub.s32 0, %v841
      %v843 = vrot.slane %v818, %v842
      %v845 = vadd.f32 %v838, %v843
      %846 = vst.msk [vmem:[%s435] sm:$0xff] %vm453, %v845
      %p847 = scmp.lt.s32.totalorder %s24, 1
      %s848 = scalar_select %p847, %s24, 1
      %s849 = smul.addr %s848, 8
      %s850 = scalar_lea.vmem %s13, %s849
      // Predicated region
      $region73: #{transformer_forward.5} parent=71 // pred_check
        %p851 = pneg %p320
      $region74: #{transformer_forward.5} parent=71 // pred_check_branch
        %853 = sbr.rel (%p851) target = $region76
      $region75: #{transformer_forward.5} parent=71 // pred_region
        _
      $region76: #{transformer_forward.5} parent=71 // pred_fallthru
        _
    $region72: #{transformer_forward.5} parent=5 // pred_fallthru
      _
    %p854 = scmp.le.s32.totalorder 2, %s19
    // Predicated region
    $region77: #{transformer_forward.5} parent=5 // pred_check
      %p855 = pneg %p854
    $region78: #{transformer_forward.5} parent=5 // pred_check_branch
      %857 = sbr.rel (%p855) target = $region80
    $region79: #{transformer_forward.5} parent=5 // pred_region
      %s858 = ssub.s32 %s19, 2
      // Predicated region
      $region81: #{transformer_forward.5} parent=79 // pred_check
        %p859 = pneg %p326
      $region82: #{transformer_forward.5} parent=79 // pred_check_branch
        %861 = sbr.rel (%p859) target = $region84
      $region83: #{transformer_forward.5} parent=79 // pred_region
        %p862 = scmp.lt.s32.totalorder %s25, 1
        %s863 = scalar_select %p862, %s25, 1
        %s864 = smul.addr %s863, 8
        %s865 = scalar_lea.vmem %s13, %s864
      $region84: #{transformer_forward.5} parent=79 // pred_fallthru
        _
    $region80: #{transformer_forward.5} parent=5 // pred_fallthru
      _
  $region6: #{transformer_forward.5} parent=0 // loop_footer
    %s23 = sadd.s32 1, %s19
  $region7: #{transformer_forward.5} parent=0 // loop_footer_branch
    %18 = sbr.rel target = $region3
  $region8: #{transformer_forward.5} parent=0 // loop_exit
    _

// kernel: transformer_forward.7
$region0: #{transformer_forward.7}
  #allocation0 [shape = 'u32[]', space=smem, size = 0x4, offset = 0x4, fixed_abs, tag = 'smem constant byte address 0x4 - core index']
  #allocation1 [shape = 'u32[144,128]{1,0:T(1,128)}', space=vmem, size = 0x12000, scoped, tag = 'internal scratch']
  %s0 = inlined_call_operand.vmem [shape: f32[2,8,32], index: 0, kind: input, shape index: {}]
  %s1 = inlined_call_operand.vmem [shape: f32[2,8,32], index: 1, kind: input, shape index: {}]
  %s2 = inlined_call_operand.vmem [shape: f32[32,32], index: 2, kind: input, shape index: {}]
  %s3 = inlined_call_operand.vmem [shape: f32[1,32], index: 3, kind: input, shape index: {}]
  %s4 = inlined_call_operand.vmem [shape: f32[32,32], index: 4, kind: input, shape index: {}]
  %s5 = inlined_call_operand.vmem [shape: f32[1,32], index: 5, kind: input, shape index: {}]
  %s6 = inlined_call_operand.vmem [shape: f32[1,32], index: 6, kind: input, shape index: {}]
  %s7 = inlined_call_operand.vmem [shape: f32[1,32], index: 7, kind: input, shape index: {}]
  %s8 = inlined_call_operand.vmem [shape: f32[32,32], index: 8, kind: input, shape index: {}]
  %s9 = inlined_call_operand.vmem [shape: f32[1,32], index: 9, kind: input, shape index: {}]
  %s10 = inlined_call_operand.vmem [shape: f32[32,32], index: 10, kind: input, shape index: {}]
  %s11 = inlined_call_operand.vmem [shape: f32[1,32], index: 11, kind: input, shape index: {}]
  %s12 = inlined_call_operand.vmem [shape: f32[1,32], index: 12, kind: input, shape index: {}]
  %s13 = inlined_call_operand.vmem [shape: f32[1,32], index: 13, kind: input, shape index: {}]
  %s14 = inlined_call_operand.vmem [shape: f32[32,64], index: 14, kind: input, shape index: {}]
  %s15 = inlined_call_operand.vmem [shape: f32[1,64], index: 15, kind: input, shape index: {}]
  %s16 = inlined_call_operand.vmem [shape: f32[64,32], index: 16, kind: input, shape index: {}]
  %s17 = inlined_call_operand.vmem [shape: f32[1,32], index: 17, kind: input, shape index: {}]
  %s18 = inlined_call_operand.vmem [shape: f32[1,32], index: 18, kind: input, shape index: {}]
  %s19 = inlined_call_operand.vmem [shape: f32[1,32], index: 19, kind: input, shape index: {}]
  %s20 = inlined_call_operand.vmem [shape: f32[2,8,32], index: 20, kind: output, shape index: {}]
  %s21 = sld [smem:[#allocation0]]
  $region113: #{transformer_forward.7} parent=0
    _
  %s23 = ssub.s32 1, %s21
  %s24 = scalar_select 0, %s23, %s21
  loop: start=0, step=1, limit=4
  $region2: #{transformer_forward.7} parent=0 // loop_pre_header
    _
  $region3: #{transformer_forward.7} parent=0 // loop_header
    %s26 = sphi 0, %s30
    %p27 = scmp.ge.s32.totalorder %s26, 4
    %s36 = sphi 0, %s38
    %s39 = sphi 0, %s36
    %s40 = sphi 0, %s39
    %s56 = sphi 0, %s40
    %s62 = sphi 0, %s64
    %s65 = sphi 0, %s62
    %s66 = sphi 0, %s65
    %s82 = sphi 0, %s66
    %s86 = sphi 0, %s86
    %s88 = sphi 0, %s86
    %s89 = sphi 0, %s88
    %s103 = sphi 0, %s89
    %s107 = sphi 0, %s107
    %s109 = sphi 0, %s107
    %s110 = sphi 0, %s109
    %s124 = sphi 0, %s110
    %s128 = sphi 0, %s128
    %s130 = sphi 0, %s128
    %s131 = sphi 0, %s130
    %s145 = sphi 0, %s131
    %s149 = sphi 0, %s149
    %s151 = sphi 0, %s149
    %s152 = sphi 0, %s151
    %s166 = sphi 0, %s152
    %s170 = sphi 0, %s170
    %s172 = sphi 0, %s170
    %s173 = sphi 0, %s172
    %s187 = sphi 0, %s173
    %s191 = sphi 0, %s191
    %s193 = sphi 0, %s191
    %s194 = sphi 0, %s193
    %s208 = sphi 0, %s194
    %s212 = sphi 0, %s212
    %s214 = sphi 0, %s212
    %s215 = sphi 0, %s214
    %s229 = sphi 0, %s215
    %s233 = sphi 0, %s233
    %s235 = sphi 0, %s233
    %s236 = sphi 0, %s235
    %s250 = sphi 0, %s236
    %s254 = sphi 0, %s254
    %s256 = sphi 0, %s254
    %s257 = sphi 0, %s256
    %s271 = sphi 0, %s257
    %s275 = sphi 0, %s275
    %s277 = sphi 0, %s275
    %s278 = sphi 0, %s277
    %s292 = sphi 0, %s278
    %s296 = sphi 0, %s296
    %s298 = sphi 0, %s296
    %s299 = sphi 0, %s298
    %s313 = sphi 0, %s299
    %s317 = sphi 0, %s317
    %s319 = sphi 0, %s317
    %s320 = sphi 0, %s319
    %s334 = sphi 0, %s320
    %s338 = sphi 0, %s338
    %s340 = sphi 0, %s338
    %s341 = sphi 0, %s340
    %s355 = sphi 0, %s341
    %s359 = sphi 0, %s359
    %s361 = sphi 0, %s359
    %s362 = sphi 0, %s361
    %s376 = sphi 0, %s362
    %s380 = sphi 0, %s380
    %s382 = sphi 0, %s380
    %s383 = sphi 0, %s382
    %s397 = sphi 0, %s383
    %s401 = sphi 0, %s401
    %s403 = sphi 0, %s401
    %s404 = sphi 0, %s403
    %s418 = sphi 0, %s404
    %s422 = sphi 0, %s422
    %s424 = sphi 0, %s422
    %s425 = sphi 0, %s424
    %s439 = sphi 0, %s425
    %s443 = sphi 0, %s443
    %s445 = sphi 0, %s443
    %s446 = sphi 0, %s445
    %s460 = sphi 0, %s446
    %s466 = sphi 0, %s468
    %s469 = sphi 0, %s466
    %s470 = sphi 0, %s469
    %s486 = sphi 0, %s470
  $region4: #{transformer_forward.7} parent=0 // loop_header_branch
    %29 = sbr.rel (%p27) target = $region8
  $region5: #{transformer_forward.7} parent=0 // loop_body
    %s31 = ssub.s32 %s26, 1
    %s32 = ssub.s32 %s26, 2
    %s33 = sadd.s32 %s26, 1
    %s34 = ssub.s32 %s26, %s33
    %p35 = scmp.eq.s32.totalorder %s34, 0
    %s37 = sadd.s32 %s36, 1
    %s38 = scalar_select %p35, %s36, %s37
    %p41 = pneg %p35
    %p42 = scmp.eq.s32.totalorder %s26, 1
    %p43 = por %p41, %p42
    %p44 = scmp.ne.s32.totalorder %s36, %s39
    %p45 = scmp.eq.s32.totalorder %s26, 0
    %p46 = por %p44, %p45
    %p47 = scmp.ne.s32.totalorder %s36, %s39
    %p48 = scmp.eq.s32.totalorder %s31, 1
    %p49 = por %p47, %p48
    %p50 = scmp.ne.s32.totalorder %s39, %s40
    %p51 = scmp.eq.s32.totalorder %s31, 0
    %p52 = por %p50, %p51
    %p53 = scmp.ne.s32.totalorder %s39, %s40
    %p54 = scmp.eq.s32.totalorder %s32, 1
    %p55 = por %p53, %p54
    %p57 = scmp.ne.s32.totalorder %s40, %s56
    %p58 = scmp.eq.s32.totalorder %s32, 0
    %p59 = por %p57, %p58
    %s60 = ssub.s32 %s26, %s33
    %p61 = scmp.eq.s32.totalorder %s60, 0
    %s63 = sadd.s32 %s62, 1
    %s64 = scalar_select %p61, %s62, %s63
    %p67 = pneg %p61
    %p68 = scmp.eq.s32.totalorder %s26, 1
    %p69 = por %p67, %p68
    %p70 = scmp.ne.s32.totalorder %s62, %s65
    %p71 = scmp.eq.s32.totalorder %s26, 0
    %p72 = por %p70, %p71
    %p73 = scmp.ne.s32.totalorder %s62, %s65
    %p74 = scmp.eq.s32.totalorder %s31, 1
    %p75 = por %p73, %p74
    %p76 = scmp.ne.s32.totalorder %s65, %s66
    %p77 = scmp.eq.s32.totalorder %s31, 0
    %p78 = por %p76, %p77
    %p79 = scmp.ne.s32.totalorder %s65, %s66
    %p80 = scmp.eq.s32.totalorder %s32, 1
    %p81 = por %p79, %p80
    %p83 = scmp.ne.s32.totalorder %s66, %s82
    %p84 = scmp.eq.s32.totalorder %s32, 0
    %p85 = por %p83, %p84
    %s87 = sadd.s32 %s86, 1
    %p90 = scmp.eq.s32.totalorder %s26, 1
    %p91 = scmp.ne.s32.totalorder %s86, %s88
    %p92 = scmp.eq.s32.totalorder %s26, 0
    %p93 = por %p91, %p92
    %p94 = scmp.ne.s32.totalorder %s86, %s88
    %p95 = scmp.eq.s32.totalorder %s31, 1
    %p96 = por %p94, %p95
    %p97 = scmp.ne.s32.totalorder %s88, %s89
    %p98 = scmp.eq.s32.totalorder %s31, 0
    %p99 = por %p97, %p98
    %p100 = scmp.ne.s32.totalorder %s88, %s89
    %p101 = scmp.eq.s32.totalorder %s32, 1
    %p102 = por %p100, %p101
    %p104 = scmp.ne.s32.totalorder %s89, %s103
    %p105 = scmp.eq.s32.totalorder %s32, 0
    %p106 = por %p104, %p105
    %s108 = sadd.s32 %s107, 1
    %p111 = scmp.eq.s32.totalorder %s26, 1
    %p112 = scmp.ne.s32.totalorder %s107, %s109
    %p113 = scmp.eq.s32.totalorder %s26, 0
    %p114 = por %p112, %p113
    %p115 = scmp.ne.s32.totalorder %s107, %s109
    %p116 = scmp.eq.s32.totalorder %s31, 1
    %p117 = por %p115, %p116
    %p118 = scmp.ne.s32.totalorder %s109, %s110
    %p119 = scmp.eq.s32.totalorder %s31, 0
    %p120 = por %p118, %p119
    %p121 = scmp.ne.s32.totalorder %s109, %s110
    %p122 = scmp.eq.s32.totalorder %s32, 1
    %p123 = por %p121, %p122
    %p125 = scmp.ne.s32.totalorder %s110, %s124
    %p126 = scmp.eq.s32.totalorder %s32, 0
    %p127 = por %p125, %p126
    %s129 = sadd.s32 %s128, 1
    %p132 = scmp.eq.s32.totalorder %s26, 1
    %p133 = scmp.ne.s32.totalorder %s128, %s130
    %p134 = scmp.eq.s32.totalorder %s26, 0
    %p135 = por %p133, %p134
    %p136 = scmp.ne.s32.totalorder %s128, %s130
    %p137 = scmp.eq.s32.totalorder %s31, 1
    %p138 = por %p136, %p137
    %p139 = scmp.ne.s32.totalorder %s130, %s131
    %p140 = scmp.eq.s32.totalorder %s31, 0
    %p141 = por %p139, %p140
    %p142 = scmp.ne.s32.totalorder %s130, %s131
    %p143 = scmp.eq.s32.totalorder %s32, 1
    %p144 = por %p142, %p143
    %p146 = scmp.ne.s32.totalorder %s131, %s145
    %p147 = scmp.eq.s32.totalorder %s32, 0
    %p148 = por %p146, %p147
    %s150 = sadd.s32 %s149, 1
    %p153 = scmp.eq.s32.totalorder %s26, 1
    %p154 = scmp.ne.s32.totalorder %s149, %s151
    %p155 = scmp.eq.s32.totalorder %s26, 0
    %p156 = por %p154, %p155
    %p157 = scmp.ne.s32.totalorder %s149, %s151
    %p158 = scmp.eq.s32.totalorder %s31, 1
    %p159 = por %p157, %p158
    %p160 = scmp.ne.s32.totalorder %s151, %s152
    %p161 = scmp.eq.s32.totalorder %s31, 0
    %p162 = por %p160, %p161
    %p163 = scmp.ne.s32.totalorder %s151, %s152
    %p164 = scmp.eq.s32.totalorder %s32, 1
    %p165 = por %p163, %p164
    %p167 = scmp.ne.s32.totalorder %s152, %s166
    %p168 = scmp.eq.s32.totalorder %s32, 0
    %p169 = por %p167, %p168
    %s171 = sadd.s32 %s170, 1
    %p174 = scmp.eq.s32.totalorder %s26, 1
    %p175 = scmp.ne.s32.totalorder %s170, %s172
    %p176 = scmp.eq.s32.totalorder %s26, 0
    %p177 = por %p175, %p176
    %p178 = scmp.ne.s32.totalorder %s170, %s172
    %p179 = scmp.eq.s32.totalorder %s31, 1
    %p180 = por %p178, %p179
    %p181 = scmp.ne.s32.totalorder %s172, %s173
    %p182 = scmp.eq.s32.totalorder %s31, 0
    %p183 = por %p181, %p182
    %p184 = scmp.ne.s32.totalorder %s172, %s173
    %p185 = scmp.eq.s32.totalorder %s32, 1
    %p186 = por %p184, %p185
    %p188 = scmp.ne.s32.totalorder %s173, %s187
    %p189 = scmp.eq.s32.totalorder %s32, 0
    %p190 = por %p188, %p189
    %s192 = sadd.s32 %s191, 1
    %p195 = scmp.eq.s32.totalorder %s26, 1
    %p196 = scmp.ne.s32.totalorder %s191, %s193
    %p197 = scmp.eq.s32.totalorder %s26, 0
    %p198 = por %p196, %p197
    %p199 = scmp.ne.s32.totalorder %s191, %s193
    %p200 = scmp.eq.s32.totalorder %s31, 1
    %p201 = por %p199, %p200
    %p202 = scmp.ne.s32.totalorder %s193, %s194
    %p203 = scmp.eq.s32.totalorder %s31, 0
    %p204 = por %p202, %p203
    %p205 = scmp.ne.s32.totalorder %s193, %s194
    %p206 = scmp.eq.s32.totalorder %s32, 1
    %p207 = por %p205, %p206
    %p209 = scmp.ne.s32.totalorder %s194, %s208
    %p210 = scmp.eq.s32.totalorder %s32, 0
    %p211 = por %p209, %p210
    %s213 = sadd.s32 %s212, 1
    %p216 = scmp.eq.s32.totalorder %s26, 1
    %p217 = scmp.ne.s32.totalorder %s212, %s214
    %p218 = scmp.eq.s32.totalorder %s26, 0
    %p219 = por %p217, %p218
    %p220 = scmp.ne.s32.totalorder %s212, %s214
    %p221 = scmp.eq.s32.totalorder %s31, 1
    %p222 = por %p220, %p221
    %p223 = scmp.ne.s32.totalorder %s214, %s215
    %p224 = scmp.eq.s32.totalorder %s31, 0
    %p225 = por %p223, %p224
    %p226 = scmp.ne.s32.totalorder %s214, %s215
    %p227 = scmp.eq.s32.totalorder %s32, 1
    %p228 = por %p226, %p227
    %p230 = scmp.ne.s32.totalorder %s215, %s229
    %p231 = scmp.eq.s32.totalorder %s32, 0
    %p232 = por %p230, %p231
    %s234 = sadd.s32 %s233, 1
    %p237 = scmp.eq.s32.totalorder %s26, 1
    %p238 = scmp.ne.s32.totalorder %s233, %s235
    %p239 = scmp.eq.s32.totalorder %s26, 0
    %p240 = por %p238, %p239
    %p241 = scmp.ne.s32.totalorder %s233, %s235
    %p242 = scmp.eq.s32.totalorder %s31, 1
    %p243 = por %p241, %p242
    %p244 = scmp.ne.s32.totalorder %s235, %s236
    %p245 = scmp.eq.s32.totalorder %s31, 0
    %p246 = por %p244, %p245
    %p247 = scmp.ne.s32.totalorder %s235, %s236
    %p248 = scmp.eq.s32.totalorder %s32, 1
    %p249 = por %p247, %p248
    %p251 = scmp.ne.s32.totalorder %s236, %s250
    %p252 = scmp.eq.s32.totalorder %s32, 0
    %p253 = por %p251, %p252
    %s255 = sadd.s32 %s254, 1
    %p258 = scmp.eq.s32.totalorder %s26, 1
    %p259 = scmp.ne.s32.totalorder %s254, %s256
    %p260 = scmp.eq.s32.totalorder %s26, 0
    %p261 = por %p259, %p260
    %p262 = scmp.ne.s32.totalorder %s254, %s256
    %p263 = scmp.eq.s32.totalorder %s31, 1
    %p264 = por %p262, %p263
    %p265 = scmp.ne.s32.totalorder %s256, %s257
    %p266 = scmp.eq.s32.totalorder %s31, 0
    %p267 = por %p265, %p266
    %p268 = scmp.ne.s32.totalorder %s256, %s257
    %p269 = scmp.eq.s32.totalorder %s32, 1
    %p270 = por %p268, %p269
    %p272 = scmp.ne.s32.totalorder %s257, %s271
    %p273 = scmp.eq.s32.totalorder %s32, 0
    %p274 = por %p272, %p273
    %s276 = sadd.s32 %s275, 1
    %p279 = scmp.eq.s32.totalorder %s26, 1
    %p280 = scmp.ne.s32.totalorder %s275, %s277
    %p281 = scmp.eq.s32.totalorder %s26, 0
    %p282 = por %p280, %p281
    %p283 = scmp.ne.s32.totalorder %s275, %s277
    %p284 = scmp.eq.s32.totalorder %s31, 1
    %p285 = por %p283, %p284
    %p286 = scmp.ne.s32.totalorder %s277, %s278
    %p287 = scmp.eq.s32.totalorder %s31, 0
    %p288 = por %p286, %p287
    %p289 = scmp.ne.s32.totalorder %s277, %s278
    %p290 = scmp.eq.s32.totalorder %s32, 1
    %p291 = por %p289, %p290
    %p293 = scmp.ne.s32.totalorder %s278, %s292
    %p294 = scmp.eq.s32.totalorder %s32, 0
    %p295 = por %p293, %p294
    %s297 = sadd.s32 %s296, 1
    %p300 = scmp.eq.s32.totalorder %s26, 1
    %p301 = scmp.ne.s32.totalorder %s296, %s298
    %p302 = scmp.eq.s32.totalorder %s26, 0
    %p303 = por %p301, %p302
    %p304 = scmp.ne.s32.totalorder %s296, %s298
    %p305 = scmp.eq.s32.totalorder %s31, 1
    %p306 = por %p304, %p305
    %p307 = scmp.ne.s32.totalorder %s298, %s299
    %p308 = scmp.eq.s32.totalorder %s31, 0
    %p309 = por %p307, %p308
    %p310 = scmp.ne.s32.totalorder %s298, %s299
    %p311 = scmp.eq.s32.totalorder %s32, 1
    %p312 = por %p310, %p311
    %p314 = scmp.ne.s32.totalorder %s299, %s313
    %p315 = scmp.eq.s32.totalorder %s32, 0
    %p316 = por %p314, %p315
    %s318 = sadd.s32 %s317, 1
    %p321 = scmp.eq.s32.totalorder %s26, 1
    %p322 = scmp.ne.s32.totalorder %s317, %s319
    %p323 = scmp.eq.s32.totalorder %s26, 0
    %p324 = por %p322, %p323
    %p325 = scmp.ne.s32.totalorder %s317, %s319
    %p326 = scmp.eq.s32.totalorder %s31, 1
    %p327 = por %p325, %p326
    %p328 = scmp.ne.s32.totalorder %s319, %s320
    %p329 = scmp.eq.s32.totalorder %s31, 0
    %p330 = por %p328, %p329
    %p331 = scmp.ne.s32.totalorder %s319, %s320
    %p332 = scmp.eq.s32.totalorder %s32, 1
    %p333 = por %p331, %p332
    %p335 = scmp.ne.s32.totalorder %s320, %s334
    %p336 = scmp.eq.s32.totalorder %s32, 0
    %p337 = por %p335, %p336
    %s339 = sadd.s32 %s338, 1
    %p342 = scmp.eq.s32.totalorder %s26, 1
    %p343 = scmp.ne.s32.totalorder %s338, %s340
    %p344 = scmp.eq.s32.totalorder %s26, 0
    %p345 = por %p343, %p344
    %p346 = scmp.ne.s32.totalorder %s338, %s340
    %p347 = scmp.eq.s32.totalorder %s31, 1
    %p348 = por %p346, %p347
    %p349 = scmp.ne.s32.totalorder %s340, %s341
    %p350 = scmp.eq.s32.totalorder %s31, 0
    %p351 = por %p349, %p350
    %p352 = scmp.ne.s32.totalorder %s340, %s341
    %p353 = scmp.eq.s32.totalorder %s32, 1
    %p354 = por %p352, %p353
    %p356 = scmp.ne.s32.totalorder %s341, %s355
    %p357 = scmp.eq.s32.totalorder %s32, 0
    %p358 = por %p356, %p357
    %s360 = sadd.s32 %s359, 1
    %p363 = scmp.eq.s32.totalorder %s26, 1
    %p364 = scmp.ne.s32.totalorder %s359, %s361
    %p365 = scmp.eq.s32.totalorder %s26, 0
    %p366 = por %p364, %p365
    %p367 = scmp.ne.s32.totalorder %s359, %s361
    %p368 = scmp.eq.s32.totalorder %s31, 1
    %p369 = por %p367, %p368
    %p370 = scmp.ne.s32.totalorder %s361, %s362
    %p371 = scmp.eq.s32.totalorder %s31, 0
    %p372 = por %p370, %p371
    %p373 = scmp.ne.s32.totalorder %s361, %s362
    %p374 = scmp.eq.s32.totalorder %s32, 1
    %p375 = por %p373, %p374
    %p377 = scmp.ne.s32.totalorder %s362, %s376
    %p378 = scmp.eq.s32.totalorder %s32, 0
    %p379 = por %p377, %p378
    %s381 = sadd.s32 %s380, 1
    %p384 = scmp.eq.s32.totalorder %s26, 1
    %p385 = scmp.ne.s32.totalorder %s380, %s382
    %p386 = scmp.eq.s32.totalorder %s26, 0
    %p387 = por %p385, %p386
    %p388 = scmp.ne.s32.totalorder %s380, %s382
    %p389 = scmp.eq.s32.totalorder %s31, 1
    %p390 = por %p388, %p389
    %p391 = scmp.ne.s32.totalorder %s382, %s383
    %p392 = scmp.eq.s32.totalorder %s31, 0
    %p393 = por %p391, %p392
    %p394 = scmp.ne.s32.totalorder %s382, %s383
    %p395 = scmp.eq.s32.totalorder %s32, 1
    %p396 = por %p394, %p395
    %p398 = scmp.ne.s32.totalorder %s383, %s397
    %p399 = scmp.eq.s32.totalorder %s32, 0
    %p400 = por %p398, %p399
    %s402 = sadd.s32 %s401, 1
    %p405 = scmp.eq.s32.totalorder %s26, 1
    %p406 = scmp.ne.s32.totalorder %s401, %s403
    %p407 = scmp.eq.s32.totalorder %s26, 0
    %p408 = por %p406, %p407
    %p409 = scmp.ne.s32.totalorder %s401, %s403
    %p410 = scmp.eq.s32.totalorder %s31, 1
    %p411 = por %p409, %p410
    %p412 = scmp.ne.s32.totalorder %s403, %s404
    %p413 = scmp.eq.s32.totalorder %s31, 0
    %p414 = por %p412, %p413
    %p415 = scmp.ne.s32.totalorder %s403, %s404
    %p416 = scmp.eq.s32.totalorder %s32, 1
    %p417 = por %p415, %p416
    %p419 = scmp.ne.s32.totalorder %s404, %s418
    %p420 = scmp.eq.s32.totalorder %s32, 0
    %p421 = por %p419, %p420
    %s423 = sadd.s32 %s422, 1
    %p426 = scmp.eq.s32.totalorder %s26, 1
    %p427 = scmp.ne.s32.totalorder %s422, %s424
    %p428 = scmp.eq.s32.totalorder %s26, 0
    %p429 = por %p427, %p428
    %p430 = scmp.ne.s32.totalorder %s422, %s424
    %p431 = scmp.eq.s32.totalorder %s31, 1
    %p432 = por %p430, %p431
    %p433 = scmp.ne.s32.totalorder %s424, %s425
    %p434 = scmp.eq.s32.totalorder %s31, 0
    %p435 = por %p433, %p434
    %p436 = scmp.ne.s32.totalorder %s424, %s425
    %p437 = scmp.eq.s32.totalorder %s32, 1
    %p438 = por %p436, %p437
    %p440 = scmp.ne.s32.totalorder %s425, %s439
    %p441 = scmp.eq.s32.totalorder %s32, 0
    %p442 = por %p440, %p441
    %s444 = sadd.s32 %s443, 1
    %p447 = scmp.eq.s32.totalorder %s26, 1
    %p448 = scmp.ne.s32.totalorder %s443, %s445
    %p449 = scmp.eq.s32.totalorder %s26, 0
    %p450 = por %p448, %p449
    %p451 = scmp.ne.s32.totalorder %s443, %s445
    %p452 = scmp.eq.s32.totalorder %s31, 1
    %p453 = por %p451, %p452
    %p454 = scmp.ne.s32.totalorder %s445, %s446
    %p455 = scmp.eq.s32.totalorder %s31, 0
    %p456 = por %p454, %p455
    %p457 = scmp.ne.s32.totalorder %s445, %s446
    %p458 = scmp.eq.s32.totalorder %s32, 1
    %p459 = por %p457, %p458
    %p461 = scmp.ne.s32.totalorder %s446, %s460
    %p462 = scmp.eq.s32.totalorder %s32, 0
    %p463 = por %p461, %p462
    %s464 = ssub.s32 %s26, %s33
    %p465 = scmp.eq.s32.totalorder %s464, 0
    %s467 = sadd.s32 %s466, 1
    %s468 = scalar_select %p465, %s466, %s467
    %p471 = pneg %p465
    %p472 = scmp.eq.s32.totalorder %s26, 1
    %p473 = por %p471, %p472
    %p474 = scmp.ne.s32.totalorder %s466, %s469
    %p475 = scmp.eq.s32.totalorder %s26, 0
    %p476 = por %p474, %p475
    %p477 = scmp.ne.s32.totalorder %s466, %s469
    %p478 = scmp.eq.s32.totalorder %s31, 1
    %p479 = por %p477, %p478
    %p480 = scmp.ne.s32.totalorder %s469, %s470
    %p481 = scmp.eq.s32.totalorder %s31, 0
    %p482 = por %p480, %p481
    %p483 = scmp.ne.s32.totalorder %s469, %s470
    %p484 = scmp.eq.s32.totalorder %s32, 1
    %p485 = por %p483, %p484
    %p487 = scmp.ne.s32.totalorder %s470, %s486
    %p488 = scmp.eq.s32.totalorder %s32, 0
    %p489 = por %p487, %p488
    %p490 = scmp.le.s32.totalorder 1, %s26
    %p491 = scmp.lt.s32.totalorder %s26, 3
    %p492 = pnand %p490, %p491
    %p493 = pneg %p492
    // Predicated region
    $region9: #{transformer_forward.7} parent=5 // pred_check
      _
    $region10: #{transformer_forward.7} parent=5 // pred_check_branch
      %495 = sbr.rel (%p492) target = $region12
    $region11: #{transformer_forward.7} parent=5 // pred_region
      %s496 = ssub.s32 %s26, 1
      // Predicated region
      $region13: #{transformer_forward.7} parent=11 // pred_check
        %p497 = pneg %p99
      $region14: #{transformer_forward.7} parent=11 // pred_check_branch
        %499 = sbr.rel (%p497) target = $region16
      $region15: #{transformer_forward.7} parent=11 // pred_region
        _
      $region16: #{transformer_forward.7} parent=11 // pred_fallthru
        _
      // Predicated region
      $region17: #{transformer_forward.7} parent=11 // pred_check
        %p500 = pneg %p120
      $region18: #{transformer_forward.7} parent=11 // pred_check_branch
        %502 = sbr.rel (%p500) target = $region20
      $region19: #{transformer_forward.7} parent=11 // pred_region
        _
      $region20: #{transformer_forward.7} parent=11 // pred_fallthru
        _
      // Predicated region
      $region21: #{transformer_forward.7} parent=11 // pred_check
        %p503 = pneg %p141
      $region22: #{transformer_forward.7} parent=11 // pred_check_branch
        %505 = sbr.rel (%p503) target = $region24
      $region23: #{transformer_forward.7} parent=11 // pred_region
        _
      $region24: #{transformer_forward.7} parent=11 // pred_fallthru
        _
      // Predicated region
      $region25: #{transformer_forward.7} parent=11 // pred_check
        %p506 = pneg %p162
      $region26: #{transformer_forward.7} parent=11 // pred_check_branch
        %508 = sbr.rel (%p506) target = $region28
      $region27: #{transformer_forward.7} parent=11 // pred_region
        _
      $region28: #{transformer_forward.7} parent=11 // pred_fallthru
        _
      // Predicated region
      $region29: #{transformer_forward.7} parent=11 // pred_check
        %p509 = pneg %p183
      $region30: #{transformer_forward.7} parent=11 // pred_check_branch
        %511 = sbr.rel (%p509) target = $region32
      $region31: #{transformer_forward.7} parent=11 // pred_region
        _
      $region32: #{transformer_forward.7} parent=11 // pred_fallthru
        _
      // Predicated region
      $region33: #{transformer_forward.7} parent=11 // pred_check
        %p512 = pneg %p204
      $region34: #{transformer_forward.7} parent=11 // pred_check_branch
        %514 = sbr.rel (%p512) target = $region36
      $region35: #{transformer_forward.7} parent=11 // pred_region
        _
      $region36: #{transformer_forward.7} parent=11 // pred_fallthru
        _
      // Predicated region
      $region37: #{transformer_forward.7} parent=11 // pred_check
        %p515 = pneg %p225
      $region38: #{transformer_forward.7} parent=11 // pred_check_branch
        %517 = sbr.rel (%p515) target = $region40
      $region39: #{transformer_forward.7} parent=11 // pred_region
        _
      $region40: #{transformer_forward.7} parent=11 // pred_fallthru
        _
      // Predicated region
      $region41: #{transformer_forward.7} parent=11 // pred_check
        %p518 = pneg %p246
      $region42: #{transformer_forward.7} parent=11 // pred_check_branch
        %520 = sbr.rel (%p518) target = $region44
      $region43: #{transformer_forward.7} parent=11 // pred_region
        _
      $region44: #{transformer_forward.7} parent=11 // pred_fallthru
        _
      // Predicated region
      $region45: #{transformer_forward.7} parent=11 // pred_check
        %p521 = pneg %p267
      $region46: #{transformer_forward.7} parent=11 // pred_check_branch
        %523 = sbr.rel (%p521) target = $region48
      $region47: #{transformer_forward.7} parent=11 // pred_region
        _
      $region48: #{transformer_forward.7} parent=11 // pred_fallthru
        _
      // Predicated region
      $region49: #{transformer_forward.7} parent=11 // pred_check
        %p524 = pneg %p288
      $region50: #{transformer_forward.7} parent=11 // pred_check_branch
        %526 = sbr.rel (%p524) target = $region52
      $region51: #{transformer_forward.7} parent=11 // pred_region
        _
      $region52: #{transformer_forward.7} parent=11 // pred_fallthru
        _
      // Predicated region
      $region53: #{transformer_forward.7} parent=11 // pred_check
        %p527 = pneg %p309
      $region54: #{transformer_forward.7} parent=11 // pred_check_branch
        %529 = sbr.rel (%p527) target = $region56
      $region55: #{transformer_forward.7} parent=11 // pred_region
        _
      $region56: #{transformer_forward.7} parent=11 // pred_fallthru
        _
      // Predicated region
      $region57: #{transformer_forward.7} parent=11 // pred_check
        %p530 = pneg %p330
      $region58: #{transformer_forward.7} parent=11 // pred_check_branch
        %532 = sbr.rel (%p530) target = $region60
      $region59: #{transformer_forward.7} parent=11 // pred_region
        _
      $region60: #{transformer_forward.7} parent=11 // pred_fallthru
        _
      // Predicated region
      $region61: #{transformer_forward.7} parent=11 // pred_check
        %p533 = pneg %p351
      $region62: #{transformer_forward.7} parent=11 // pred_check_branch
        %535 = sbr.rel (%p533) target = $region64
      $region63: #{transformer_forward.7} parent=11 // pred_region
        _
      $region64: #{transformer_forward.7} parent=11 // pred_fallthru
        _
      // Predicated region
      $region65: #{transformer_forward.7} parent=11 // pred_check
        %p536 = pneg %p372
      $region66: #{transformer_forward.7} parent=11 // pred_check_branch
        %538 = sbr.rel (%p536) target = $region68
      $region67: #{transformer_forward.7} parent=11 // pred_region
        _
      $region68: #{transformer_forward.7} parent=11 // pred_fallthru
        _
      // Predicated region
      $region69: #{transformer_forward.7} parent=11 // pred_check
        %p539 = pneg %p393
      $region70: #{transformer_forward.7} parent=11 // pred_check_branch
        %541 = sbr.rel (%p539) target = $region72
      $region71: #{transformer_forward.7} parent=11 // pred_region
        _
      $region72: #{transformer_forward.7} parent=11 // pred_fallthru
        _
      // Predicated region
      $region73: #{transformer_forward.7} parent=11 // pred_check
        %p542 = pneg %p414
      $region74: #{transformer_forward.7} parent=11 // pred_check_branch
        %544 = sbr.rel (%p542) target = $region76
      $region75: #{transformer_forward.7} parent=11 // pred_region
        _
      $region76: #{transformer_forward.7} parent=11 // pred_fallthru
        _
      // Predicated region
      $region77: #{transformer_forward.7} parent=11 // pred_check
        %p545 = pneg %p435
      $region78: #{transformer_forward.7} parent=11 // pred_check_branch
        %547 = sbr.rel (%p545) target = $region80
      $region79: #{transformer_forward.7} parent=11 // pred_region
        _
      $region80: #{transformer_forward.7} parent=11 // pred_fallthru
        _
      // Predicated region
      $region81: #{transformer_forward.7} parent=11 // pred_check
        %p548 = pneg %p456
      $region82: #{transformer_forward.7} parent=11 // pred_check_branch
        %550 = sbr.rel (%p548) target = $region84
      $region83: #{transformer_forward.7} parent=11 // pred_region
        _
      $region84: #{transformer_forward.7} parent=11 // pred_fallthru
        _
    $region12: #{transformer_forward.7} parent=5 // pred_fallthru
      _
    %p551 = scmp.lt.s32.totalorder %s26, 2
    // Predicated region
    $region85: #{transformer_forward.7} parent=5 // pred_check
      %p552 = pneg %p551
    $region86: #{transformer_forward.7} parent=5 // pred_check_branch
      %554 = sbr.rel (%p552) target = $region88
    $region87: #{transformer_forward.7} parent=5 // pred_region
      // Predicated region
      $region89: #{transformer_forward.7} parent=87 // pred_check
        %p555 = pneg %p46
      $region90: #{transformer_forward.7} parent=87 // pred_check_branch
        %557 = sbr.rel (%p555) target = $region92
      $region91: #{transformer_forward.7} parent=87 // pred_region
        %p558 = scmp.lt.s32.totalorder %s26, 1
        %s559 = scalar_select %p558, %s26, 1
        %s560 = smul.addr %s559, 8
        %s561 = scalar_lea.vmem %s0, %s560
      $region92: #{transformer_forward.7} parent=87 // pred_fallthru
        _
      // Predicated region
      $region93: #{transformer_forward.7} parent=87 // pred_check
        %p562 = pneg %p72
      $region94: #{transformer_forward.7} parent=87 // pred_check_branch
        %564 = sbr.rel (%p562) target = $region96
      $region95: #{transformer_forward.7} parent=87 // pred_region
        %p565 = scmp.lt.s32.totalorder %s26, 1
        %s566 = scalar_select %p565, %s26, 1
        %s567 = smul.addr %s566, 8
        %s568 = scalar_lea.vmem %s1, %s567
      $region96: #{transformer_forward.7} parent=87 // pred_fallthru
        _
    $region88: #{transformer_forward.7} parent=5 // pred_fallthru
      _
    %p569 = scmp.le.s32.totalorder 1, %s26
    %p570 = scmp.lt.s32.totalorder %s26, 3
    %p571 = pnand %p569, %p570
    %p572 = pneg %p571
    // Predicated region
    $region97: #{transformer_forward.7} parent=5 // pred_check
      _
    $region98: #{transformer_forward.7} parent=5 // pred_check_branch
      %574 = sbr.rel (%p571) target = $region100
    $region99: #{transformer_forward.7} parent=5 // pred_region
      %s575 = ssub.s32 %s26, 1
      %p576 = scmp.lt.s32.totalorder %s31, 1
      %s577 = scalar_select %p576, %s31, 1
      %s578 = smul.addr %s577, 8
      %s579 = scalar_lea.vmem %s0, %s578
      %p580 = pneg %p52
      %p581 = pneg %p49
      %p582 = scmp.lt.s32.totalorder %s31, 1
      %s583 = scalar_select %p582, %s31, 1
      %s584 = smul.addr %s583, 8
      %s585 = scalar_lea.vmem %s1, %s584
      %p586 = pneg %p78
      %p587 = pneg %p75
      %p588 = pneg %p99
      %p589 = pneg %p96
      %p590 = pneg %p120
      %p591 = pneg %p117
      %p592 = pneg %p141
      %p593 = pneg %p138
      %p594 = pneg %p162
      %p595 = pneg %p159
      %p596 = pneg %p183
      %p597 = pneg %p180
      %p598 = pneg %p204
      %p599 = pneg %p201
      %p600 = pneg %p225
      %p601 = pneg %p222
      %p602 = pneg %p246
      %p603 = pneg %p243
      %p604 = pneg %p267
      %p605 = pneg %p264
      %p606 = pneg %p288
      %p607 = pneg %p285
      %p608 = pneg %p309
      %p609 = pneg %p306
      %p610 = pneg %p330
      %p611 = pneg %p327
      %p612 = pneg %p351
      %p613 = pneg %p348
      %p614 = pneg %p372
      %p615 = pneg %p369
      %p616 = pneg %p393
      %p617 = pneg %p390
      %p618 = pneg %p414
      %p619 = pneg %p411
      %p620 = pneg %p435
      %p621 = pneg %p432
      %p622 = pneg %p456
      %p623 = pneg %p453
      %p624 = pneg %p482
      %p625 = pneg %p479
      %p626 = scmp.lt.s32.totalorder %s31, 1
      %s627 = scalar_select %p626, %s31, 1
      %s628 = smul.addr %s627, 8
      %s629 = scalar_lea.vmem %s20, %s628
      %p630 = scmp.lt.s32.totalorder %s31, 1
      %s631 = scalar_select %p630, %s31, 1
      %s632 = smul.addr %s631, 8
      %s633 = scalar_lea.vmem %s0, %s632
      %p634 = scmp.lt.s32.totalorder %s31, 1
      %s635 = scalar_select %p634, %s31, 1
      %s636 = smul.addr %s635, 8
      %s637 = scalar_lea.vmem %s1, %s636
      %p638 = scmp.lt.s32.totalorder %s31, 1
      %s639 = scalar_select %p638, %s31, 1
      %s640 = smul.addr %s639, 8
      %s641 = scalar_lea.vmem %s20, %s640
      %v642 = vld [vmem:[%s633] sm:$0xff]
      %v643 = vld [vmem:[%s637] sm:$0xff]
      %v644 = vld [vmem:[%s2] sm:$0xff]
      %v645 = vld [vmem:[%s2 + $0x8] sm:$0xff]
      %v646 = vld [vmem:[%s2 + $0x10] sm:$0xff]
      %v647 = vld [vmem:[%s2 + $0x18] sm:$0xff]
      %v648 = vld [vmem:[%s3] sm:$0x1]
      %v649 = vld [vmem:[%s4] sm:$0xff]
      %v650 = vld [vmem:[%s4 + $0x8] sm:$0xff]
      %v651 = vld [vmem:[%s4 + $0x10] sm:$0xff]
      %v652 = vld [vmem:[%s4 + $0x18] sm:$0xff]
      %v653 = vld [vmem:[%s5] sm:$0x1]
      %v655 = vlaneseq
      %v656 = vshrl.u32 %v655, 7
      %v657 = vsub.s32 0, %v656
      %v658 = vrot.slane %v648, %v657
      %vm660 = vcmask 261120
      %v662 = vsel %vm660, %v642, 0
      %664 = vmatprep.subr.mxu0 0.0
      %665 = vmatpush1.msra.mxu0 %v644
      %666 = vmatprep.subr.mxu0 0.0
      %667 = vmatpush1.msra.mxu0 %v645
      %668 = vmatprep.subr.mxu0 0.0
      %669 = vmatpush1.msra.mxu0 %v646
      %670 = vmatprep.subr.mxu0 0.0
      %671 = vmatpush1.msra.mxu0 %v647
      %672 = vmatprep.subr.mxu0 0.0
      %673 = vmatpush1.msra.mxu0 0.0
      %674 = vmatprep.subr.mxu0 0.0
      %675 = vmatpush1.msra.mxu0 0.0
      %676 = vmatprep.subr.mxu0 0.0
      %677 = vmatpush1.msra.mxu0 0.0
      %678 = vmatprep.subr.mxu0 0.0
      %679 = vmatpush1.msra.mxu0 0.0
      %680 = vmatprep.subr.mxu0 0.0
      %681 = vmatpush1.msra.mxu0 0.0
      %682 = vmatprep.subr.mxu0 0.0
      %683 = vmatpush1.msra.mxu0 0.0
      %684 = vmatprep.subr.mxu0 0.0
      %685 = vmatpush1.msra.mxu0 0.0
      %686 = vmatprep.subr.mxu0 0.0
      %687 = vmatpush1.msra.mxu0 0.0
      %688 = vmatprep.subr.mxu0 0.0
      %689 = vmatpush1.msra.mxu0 0.0
      %690 = vmatprep.subr.mxu0 0.0
      %691 = vmatpush1.msra.mxu0 0.0
      %692 = vmatprep.subr.mxu0 0.0
      %693 = vmatpush1.msra.mxu0 0.0
      %694 = vmatprep.subr.mxu0 0.0
      %695 = vmatpush1.msra.mxu0 0.0
      %696 = vmatprep.subr.mxu0 0.0
      %697 = vmatpush1.msra.mxu0 0.0
      %698 = vmatprep.subr.mxu0 0.0
      %699 = vmatpush1.msra.mxu0 0.0
      %700 = vmatprep.subr.mxu0 0.0
      %701 = vmatpush1.msra.mxu0 0.0
      %702 = vmatprep.subr.mxu0 0.0
      %703 = vmatpush1.msra.mxu0 0.0
      %704 = vmatprep.subr.mxu0 0.0
      %705 = vmatpush1.msra.mxu0 0.0
      %706 = vmatprep.subr.mxu0 0.0
      %707 = vmatpush1.msra.mxu0 0.0
      %708 = vmatprep.subr.mxu0 0.0
      %709 = vmatpush1.msra.mxu0 0.0
      %710 = vmatprep.subr.mxu0 0.0
      %711 = vmatpush1.msra.mxu0 0.0
      %712 = vmatprep.subr.mxu0 0.0
      %713 = vmatpush1.msra.mxu0 0.0
      %714 = vmatprep.subr.mxu0 0.0
      %715 = vmatpush1.msra.mxu0 0.0
      %716 = vmatprep.subr.mxu0 0.0
      %717 = vmatpush1.msra.mxu0 0.0
      %718 = vmatprep.subr.mxu0 0.0
      %719 = vmatpush1.msra.mxu0 0.0
      %720 = vmatprep.subr.mxu0 0.0
      %721 = vmatpush1.msra.mxu0 0.0
      %722 = vmatprep.subr.mxu0 0.0
      %723 = vmatpush1.msra.mxu0 0.0
      %724 = vmatprep.subr.mxu0 0.0
      %725 = vmatpush1.msra.mxu0 0.0
      %726 = vmatprep.subr.mxu0 0.0
      %727 = vmatpush1.msra.mxu0 0.0
      %728 = vmatprep.mubr.f32.mxu0 0.0
      %729 = vmatmul.mubr.f32.gmra.mrb[0].mxu0 %v662
      %v730 = vpop.f32.mrb[0].mxu0
      %v731 = vadd.f32 %v658, %v730
      %v732 = vpop.f32.mrb[0].mxu0
      %733 = vdwg.mxu0
      %v734 = vsel %vm660, %v731, 0.0
      %v735 = vrot.slane %v734, 4
      %v736 = vadd.f32 %v734, %v735
      %v737 = vrot.slane %v736, 2
      %v738 = vadd.f32 %v736, %v737
      %v739 = vrot.slane %v738, 1
      %v740 = vadd.f32 %v738, %v739
      %v742 = vsel %vm660, %v740, 0
      %744 = vmatprep.subr.mxu0 0.0
      %745 = vmatpush1.msra.mxu0 %v649
      %746 = vmatprep.subr.mxu0 0.0
      %747 = vmatpush1.msra.mxu0 %v650
      %748 = vmatprep.subr.mxu0 0.0
      %749 = vmatpush1.msra.mxu0 %v651
      %750 = vmatprep.subr.mxu0 0.0
      %751 = vmatpush1.msra.mxu0 %v652
      %752 = vmatprep.subr.mxu0 0.0
      %753 = vmatpush1.msra.mxu0 0.0
      %754 = vmatprep.subr.mxu0 0.0
      %755 = vmatpush1.msra.mxu0 0.0
      %756 = vmatprep.subr.mxu0 0.0
      %757 = vmatpush1.msra.mxu0 0.0
      %758 = vmatprep.subr.mxu0 0.0
      %759 = vmatpush1.msra.mxu0 0.0
      %760 = vmatprep.subr.mxu0 0.0
      %761 = vmatpush1.msra.mxu0 0.0
      %762 = vmatprep.subr.mxu0 0.0
      %763 = vmatpush1.msra.mxu0 0.0
      %764 = vmatprep.subr.mxu0 0.0
      %765 = vmatpush1.msra.mxu0 0.0
      %766 = vmatprep.subr.mxu0 0.0
      %767 = vmatpush1.msra.mxu0 0.0
      %768 = vmatprep.subr.mxu0 0.0
      %769 = vmatpush1.msra.mxu0 0.0
      %770 = vmatprep.subr.mxu0 0.0
      %771 = vmatpush1.msra.mxu0 0.0
      %772 = vmatprep.subr.mxu0 0.0
      %773 = vmatpush1.msra.mxu0 0.0
      %774 = vmatprep.subr.mxu0 0.0
      %775 = vmatpush1.msra.mxu0 0.0
      %776 = vmatprep.subr.mxu0 0.0
      %777 = vmatpush1.msra.mxu0 0.0
      %778 = vmatprep.subr.mxu0 0.0
      %779 = vmatpush1.msra.mxu0 0.0
      %780 = vmatprep.subr.mxu0 0.0
      %781 = vmatpush1.msra.mxu0 0.0
      %782 = vmatprep.subr.mxu0 0.0
      %783 = vmatpush1.msra.mxu0 0.0
      %784 = vmatprep.subr.mxu0 0.0
      %785 = vmatpush1.msra.mxu0 0.0
      %786 = vmatprep.subr.mxu0 0.0
      %787 = vmatpush1.msra.mxu0 0.0
      %788 = vmatprep.subr.mxu0 0.0
      %789 = vmatpush1.msra.mxu0 0.0
      %790 = vmatprep.subr.mxu0 0.0
      %791 = vmatpush1.msra.mxu0 0.0
      %792 = vmatprep.subr.mxu0 0.0
      %793 = vmatpush1.msra.mxu0 0.0
      %794 = vmatprep.subr.mxu0 0.0
      %795 = vmatpush1.msra.mxu0 0.0
      %796 = vmatprep.subr.mxu0 0.0
      %797 = vmatpush1.msra.mxu0 0.0
      %798 = vmatprep.subr.mxu0 0.0
      %799 = vmatpush1.msra.mxu0 0.0
      %800 = vmatprep.subr.mxu0 0.0
      %801 = vmatpush1.msra.mxu0 0.0
      %802 = vmatprep.subr.mxu0 0.0
      %803 = vmatpush1.msra.mxu0 0.0
      %804 = vmatprep.subr.mxu0 0.0
      %805 = vmatpush1.msra.mxu0 0.0
      %806 = vmatprep.subr.mxu0 0.0
      %807 = vmatpush1.msra.mxu0 0.0
      %808 = vmatprep.mubr.f32.mxu0 0.0
      %809 = vmatmul.mubr.f32.gmra.mrb[0].mxu0 %v742
      %v810 = vpop.f32.mrb[0].mxu0
      %v811 = vadd.f32 %v653, %v810
      %v812 = vpop.f32.mrb[0].mxu0
      %813 = vdwg.mxu0
      %v814 = vlaneseq
      %v815 = vshrl.u32 %v814, 7
      %v816 = vsub.s32 0, %v815
      %v817 = vrot.slane %v811, %v816
      %v818 = vadd.f32 %v642, %v817
      %v819 = vld [vmem:[%s6] sm:$0x1]
      %v820 = vld [vmem:[%s7] sm:$0x1]
      %v821 = vsel %vm660, %v818, 0.0
      %822 = vadd.xlane.f32.xlu0 %v821
      %v823 = vpop.xlane.xlu0 %822
      %v824 = vrcp.pop 32.0
      %v825 = vmul.f32 %v823, %v824
      %v826 = vsub.f32 %v818, %v825
      %v827 = vmul.f32 %v826, %v826
      %v828 = vsel %vm660, %v827, 0.0
      %829 = vadd.xlane.f32.xlu0 %v828
      %v830 = vpop.xlane.xlu0 %829
      %v831 = vmul.f32 %v830, %v824
      %v832 = vadd.f32 %v831, 1e-05
      %v833 = vrsqrt.pop %v832
      %v834 = vmul.f32 %v826, %v833
      %v836 = vlaneseq
      %v837 = vshrl.u32 %v836, 7
      %v838 = vsub.s32 0, %v837
      %v839 = vrot.slane %v819, %v838
      %v841 = vmul.f32 %v834, %v839
      %v843 = vlaneseq
      %v844 = vshrl.u32 %v843, 7
      %v845 = vsub.s32 0, %v844
      %v846 = vrot.slane %v820, %v845
      %v848 = vadd.f32 %v841, %v846
      %v849 = vld [vmem:[%s8] sm:$0xff]
      %v850 = vld [vmem:[%s8 + $0x8] sm:$0xff]
      %v851 = vld [vmem:[%s8 + $0x10] sm:$0xff]
      %v852 = vld [vmem:[%s8 + $0x18] sm:$0xff]
      %v853 = vld [vmem:[%s9] sm:$0x1]
      %v854 = vld [vmem:[%s10] sm:$0xff]
      %v855 = vld [vmem:[%s10 + $0x8] sm:$0xff]
      %v856 = vld [vmem:[%s10 + $0x10] sm:$0xff]
      %v857 = vld [vmem:[%s10 + $0x18] sm:$0xff]
      %v858 = vld [vmem:[%s11] sm:$0x1]
      %v860 = vlaneseq
      %v861 = vshrl.u32 %v860, 7
      %v862 = vsub.s32 0, %v861
      %v863 = vrot.slane %v853, %v862
      %v866 = vsel %vm660, %v643, 0
      %868 = vmatprep.subr.mxu0 0.0
      %869 = vmatpush1.msra.mxu0 %v849
      %870 = vmatprep.subr.mxu0 0.0
      %871 = vmatpush1.msra.mxu0 %v850
      %872 = vmatprep.subr.mxu0 0.0
      %873 = vmatpush1.msra.mxu0 %v851
      %874 = vmatprep.subr.mxu0 0.0
      %875 = vmatpush1.msra.mxu0 %v852
      %876 = vmatprep.subr.mxu0 0.0
      %877 = vmatpush1.msra.mxu0 0.0
      %878 = vmatprep.subr.mxu0 0.0
      %879 = vmatpush1.msra.mxu0 0.0
      %880 = vmatprep.subr.mxu0 0.0
      %881 = vmatpush1.msra.mxu0 0.0
      %882 = vmatprep.subr.mxu0 0.0
      %883 = vmatpush1.msra.mxu0 0.0
      %884 = vmatprep.subr.mxu0 0.0
      %885 = vmatpush1.msra.mxu0 0.0
      %886 = vmatprep.subr.mxu0 0.0
      %887 = vmatpush1.msra.mxu0 0.0
      %888 = vmatprep.subr.mxu0 0.0
      %889 = vmatpush1.msra.mxu0 0.0
      %890 = vmatprep.subr.mxu0 0.0
      %891 = vmatpush1.msra.mxu0 0.0
      %892 = vmatprep.subr.mxu0 0.0
      %893 = vmatpush1.msra.mxu0 0.0
      %894 = vmatprep.subr.mxu0 0.0
      %895 = vmatpush1.msra.mxu0 0.0
      %896 = vmatprep.subr.mxu0 0.0
      %897 = vmatpush1.msra.mxu0 0.0
      %898 = vmatprep.subr.mxu0 0.0
      %899 = vmatpush1.msra.mxu0 0.0
      %900 = vmatprep.subr.mxu0 0.0
      %901 = vmatpush1.msra.mxu0 0.0
      %902 = vmatprep.subr.mxu0 0.0
      %903 = vmatpush1.msra.mxu0 0.0
      %904 = vmatprep.subr.mxu0 0.0
      %905 = vmatpush1.msra.mxu0 0.0
      %906 = vmatprep.subr.mxu0 0.0
      %907 = vmatpush1.msra.mxu0 0.0
      %908 = vmatprep.subr.mxu0 0.0
      %909 = vmatpush1.msra.mxu0 0.0
      %910 = vmatprep.subr.mxu0 0.0
      %911 = vmatpush1.msra.mxu0 0.0
      %912 = vmatprep.subr.mxu0 0.0
      %913 = vmatpush1.msra.mxu0 0.0
      %914 = vmatprep.subr.mxu0 0.0
      %915 = vmatpush1.msra.mxu0 0.0
      %916 = vmatprep.subr.mxu0 0.0
      %917 = vmatpush1.msra.mxu0 0.0
      %918 = vmatprep.subr.mxu0 0.0
      %919 = vmatpush1.msra.mxu0 0.0
      %920 = vmatprep.subr.mxu0 0.0
      %921 = vmatpush1.msra.mxu0 0.0
      %922 = vmatprep.subr.mxu0 0.0
      %923 = vmatpush1.msra.mxu0 0.0
      %924 = vmatprep.subr.mxu0 0.0
      %925 = vmatpush1.msra.mxu0 0.0
      %926 = vmatprep.subr.mxu0 0.0
      %927 = vmatpush1.msra.mxu0 0.0
      %928 = vmatprep.subr.mxu0 0.0
      %929 = vmatpush1.msra.mxu0 0.0
      %930 = vmatprep.subr.mxu0 0.0
      %931 = vmatpush1.msra.mxu0 0.0
      %932 = vmatprep.mubr.f32.mxu0 0.0
      %933 = vmatmul.mubr.f32.gmra.mrb[0].mxu0 %v866
      %v934 = vpop.f32.mrb[0].mxu0
      %v935 = vadd.f32 %v863, %v934
      %v936 = vpop.f32.mrb[0].mxu0
      %937 = vdwg.mxu0
      %v938 = vsel %vm660, %v935, 0.0
      %v939 = vrot.slane %v938, 4
      %v940 = vadd.f32 %v938, %v939
      %v941 = vrot.slane %v940, 2
      %v942 = vadd.f32 %v940, %v941
      %v943 = vrot.slane %v942, 1
      %v944 = vadd.f32 %v942, %v943
      %v946 = vsel %vm660, %v944, 0
      %948 = vmatprep.subr.mxu0 0.0
      %949 = vmatpush1.msra.mxu0 %v854
      %950 = vmatprep.subr.mxu0 0.0
      %951 = vmatpush1.msra.mxu0 %v855
      %952 = vmatprep.subr.mxu0 0.0
      %953 = vmatpush1.msra.mxu0 %v856
      %954 = vmatprep.subr.mxu0 0.0
      %955 = vmatpush1.msra.mxu0 %v857
      %956 = vmatprep.subr.mxu0 0.0
      %957 = vmatpush1.msra.mxu0 0.0
      %958 = vmatprep.subr.mxu0 0.0
      %959 = vmatpush1.msra.mxu0 0.0
      %960 = vmatprep.subr.mxu0 0.0
      %961 = vmatpush1.msra.mxu0 0.0
      %962 = vmatprep.subr.mxu0 0.0
      %963 = vmatpush1.msra.mxu0 0.0
      %964 = vmatprep.subr.mxu0 0.0
      %965 = vmatpush1.msra.mxu0 0.0
      %966 = vmatprep.subr.mxu0 0.0
      %967 = vmatpush1.msra.mxu0 0.0
      %968 = vmatprep.subr.mxu0 0.0
      %969 = vmatpush1.msra.mxu0 0.0
      %970 = vmatprep.subr.mxu0 0.0
      %971 = vmatpush1.msra.mxu0 0.0
      %972 = vmatprep.subr.mxu0 0.0
      %973 = vmatpush1.msra.mxu0 0.0
      %974 = vmatprep.subr.mxu0 0.0
      %975 = vmatpush1.msra.mxu0 0.0
      %976 = vmatprep.subr.mxu0 0.0
      %977 = vmatpush1.msra.mxu0 0.0
      %978 = vmatprep.subr.mxu0 0.0
      %979 = vmatpush1.msra.mxu0 0.0
      %980 = vmatprep.subr.mxu0 0.0
      %981 = vmatpush1.msra.mxu0 0.0
      %982 = vmatprep.subr.mxu0 0.0
      %983 = vmatpush1.msra.mxu0 0.0
      %984 = vmatprep.subr.mxu0 0.0
      %985 = vmatpush1.msra.mxu0 0.0
      %986 = vmatprep.subr.mxu0 0.0
      %987 = vmatpush1.msra.mxu0 0.0
      %988 = vmatprep.subr.mxu0 0.0
      %989 = vmatpush1.msra.mxu0 0.0
      %990 = vmatprep.subr.mxu0 0.0
      %991 = vmatpush1.msra.mxu0 0.0
      %992 = vmatprep.subr.mxu0 0.0
      %993 = vmatpush1.msra.mxu0 0.0
      %994 = vmatprep.subr.mxu0 0.0
      %995 = vmatpush1.msra.mxu0 0.0
      %996 = vmatprep.subr.mxu0 0.0
      %997 = vmatpush1.msra.mxu0 0.0
      %998 = vmatprep.subr.mxu0 0.0
      %999 = vmatpush1.msra.mxu0 0.0
      %1000 = vmatprep.subr.mxu0 0.0
      %1001 = vmatpush1.msra.mxu0 0.0
      %1002 = vmatprep.subr.mxu0 0.0
      %1003 = vmatpush1.msra.mxu0 0.0
      %1004 = vmatprep.subr.mxu0 0.0
      %1005 = vmatpush1.msra.mxu0 0.0
      %1006 = vmatprep.subr.mxu0 0.0
      %1007 = vmatpush1.msra.mxu0 0.0
      %1008 = vmatprep.subr.mxu0 0.0
      %1009 = vmatpush1.msra.mxu0 0.0
      %1010 = vmatprep.subr.mxu0 0.0
      %1011 = vmatpush1.msra.mxu0 0.0
      %1012 = vmatprep.mubr.f32.mxu0 0.0
      %1013 = vmatmul.mubr.f32.gmra.mrb[0].mxu0 %v946
      %v1014 = vpop.f32.mrb[0].mxu0
      %v1015 = vadd.f32 %v858, %v1014
      %v1016 = vpop.f32.mrb[0].mxu0
      %1017 = vdwg.mxu0
      %v1018 = vlaneseq
      %v1019 = vshrl.u32 %v1018, 7
      %v1020 = vsub.s32 0, %v1019
      %v1021 = vrot.slane %v1015, %v1020
      %v1022 = vadd.f32 %v848, %v1021
      %v1023 = vld [vmem:[%s12] sm:$0x1]
      %v1024 = vld [vmem:[%s13] sm:$0x1]
      %v1025 = vsel %vm660, %v1022, 0.0
      %1026 = vadd.xlane.f32.xlu0 %v1025
      %v1027 = vpop.xlane.xlu0 %1026
      %v1028 = vmul.f32 %v1027, %v824
      %v1029 = vsub.f32 %v1022, %v1028
      %v1030 = vmul.f32 %v1029, %v1029
      %v1031 = vsel %vm660, %v1030, 0.0
      %1032 = vadd.xlane.f32.xlu0 %v1031
      %v1033 = vpop.xlane.xlu0 %1032
      %v1034 = vmul.f32 %v1033, %v824
      %v1035 = vadd.f32 %v1034, 1e-05
      %v1036 = vrsqrt.pop %v1035
      %v1037 = vmul.f32 %v1029, %v1036
      %v1039 = vlaneseq
      %v1040 = vshrl.u32 %v1039, 7
      %v1041 = vsub.s32 0, %v1040
      %v1042 = vrot.slane %v1023, %v1041
      %v1044 = vmul.f32 %v1037, %v1042
      %v1046 = vlaneseq
      %v1047 = vshrl.u32 %v1046, 7
      %v1048 = vsub.s32 0, %v1047
      %v1049 = vrot.slane %v1024, %v1048
      %v1051 = vadd.f32 %v1044, %v1049
      %v1052 = vld [vmem:[%s14] sm:$0xff]
      %v1053 = vld [vmem:[%s14 + $0x8] sm:$0xff]
      %v1054 = vld [vmem:[%s14 + $0x10] sm:$0xff]
      %v1055 = vld [vmem:[%s14 + $0x18] sm:$0xff]
      %v1056 = vld [vmem:[%s15] sm:$0x1]
      %v1058 = vlaneseq
      %v1059 = vshrl.u32 %v1058, 7
      %v1060 = vsub.s32 0, %v1059
      %v1061 = vrot.slane %v1056, %v1060
      %v1064 = vsel %vm660, %v1051, 0
      %1066 = vmatprep.subr.mxu0 0.0
      %1067 = vmatpush1.msra.mxu0 %v1052
      %1068 = vmatprep.subr.mxu0 0.0
      %1069 = vmatpush1.msra.mxu0 %v1053
      %1070 = vmatprep.subr.mxu0 0.0
      %1071 = vmatpush1.msra.mxu0 %v1054
      %1072 = vmatprep.subr.mxu0 0.0
      %1073 = vmatpush1.msra.mxu0 %v1055
      %1074 = vmatprep.subr.mxu0 0.0
      %1075 = vmatpush1.msra.mxu0 0.0
      %1076 = vmatprep.subr.mxu0 0.0
      %1077 = vmatpush1.msra.mxu0 0.0
      %1078 = vmatprep.subr.mxu0 0.0
      %1079 = vmatpush1.msra.mxu0 0.0
      %1080 = vmatprep.subr.mxu0 0.0
      %1081 = vmatpush1.msra.mxu0 0.0
      %1082 = vmatprep.subr.mxu0 0.0
      %1083 = vmatpush1.msra.mxu0 0.0
      %1084 = vmatprep.subr.mxu0 0.0
      %1085 = vmatpush1.msra.mxu0 0.0
      %1086 = vmatprep.subr.mxu0 0.0
      %1087 = vmatpush1.msra.mxu0 0.0
      %1088 = vmatprep.subr.mxu0 0.0
      %1089 = vmatpush1.msra.mxu0 0.0
      %1090 = vmatprep.subr.mxu0 0.0
      %1091 = vmatpush1.msra.mxu0 0.0
      %1092 = vmatprep.subr.mxu0 0.0
      %1093 = vmatpush1.msra.mxu0 0.0
      %1094 = vmatprep.subr.mxu0 0.0
      %1095 = vmatpush1.msra.mxu0 0.0
      %1096 = vmatprep.subr.mxu0 0.0
      %1097 = vmatpush1.msra.mxu0 0.0
      %1098 = vmatprep.subr.mxu0 0.0
      %1099 = vmatpush1.msra.mxu0 0.0
      %1100 = vmatprep.subr.mxu0 0.0
      %1101 = vmatpush1.msra.mxu0 0.0
      %1102 = vmatprep.subr.mxu0 0.0
      %1103 = vmatpush1.msra.mxu0 0.0
      %1104 = vmatprep.subr.mxu0 0.0
      %1105 = vmatpush1.msra.mxu0 0.0
      %1106 = vmatprep.subr.mxu0 0.0
      %1107 = vmatpush1.msra.mxu0 0.0
      %1108 = vmatprep.subr.mxu0 0.0
      %1109 = vmatpush1.msra.mxu0 0.0
      %1110 = vmatprep.subr.mxu0 0.0
      %1111 = vmatpush1.msra.mxu0 0.0
      %1112 = vmatprep.subr.mxu0 0.0
      %1113 = vmatpush1.msra.mxu0 0.0
      %1114 = vmatprep.subr.mxu0 0.0
      %1115 = vmatpush1.msra.mxu0 0.0
      %1116 = vmatprep.subr.mxu0 0.0
      %1117 = vmatpush1.msra.mxu0 0.0
      %1118 = vmatprep.subr.mxu0 0.0
      %1119 = vmatpush1.msra.mxu0 0.0
      %1120 = vmatprep.subr.mxu0 0.0
      %1121 = vmatpush1.msra.mxu0 0.0
      %1122 = vmatprep.subr.mxu0 0.0
      %1123 = vmatpush1.msra.mxu0 0.0
      %1124 = vmatprep.subr.mxu0 0.0
      %1125 = vmatpush1.msra.mxu0 0.0
      %1126 = vmatprep.subr.mxu0 0.0
      %1127 = vmatpush1.msra.mxu0 0.0
      %1128 = vmatprep.subr.mxu0 0.0
      %1129 = vmatpush1.msra.mxu0 0.0
      %1130 = vmatprep.mubr.f32.mxu0 0.0
      %1131 = vmatmul.mubr.f32.gmra.mrb[0].mxu0 %v1064
      %v1132 = vpop.f32.mrb[0].mxu0
      %v1133 = vadd.f32 %v1061, %v1132
      %v1134 = vpop.f32.mrb[0].mxu0
      %1135 = vdwg.mxu0
      %v1136 = vmax.f32 %v1133, 0.0
      %v1137 = vld [vmem:[%s16] sm:$0xff]
      %v1138 = vld [vmem:[%s16 + $0x8] sm:$0xff]
      %v1139 = vld [vmem:[%s16 + $0x10] sm:$0xff]
      %v1140 = vld [vmem:[%s16 + $0x18] sm:$0xff]
      %v1141 = vld [vmem:[%s16 + $0x20] sm:$0xff]
      %v1142 = vld [vmem:[%s16 + $0x28] sm:$0xff]
      %v1143 = vld [vmem:[%s16 + $0x30] sm:$0xff]
      %v1144 = vld [vmem:[%s16 + $0x38] sm:$0xff]
      %v1145 = vld [vmem:[%s17] sm:$0x1]
      %v1147 = vlaneseq
      %v1148 = vshrl.u32 %v1147, 7
      %v1149 = vsub.s32 0, %v1148
      %v1150 = vrot.slane %v1145, %v1149
      %vm1152 = vcmask 523264
      %v1154 = vsel %vm1152, %v1136, 0
      %1156 = vmatprep.subr.mxu0 0.0
      %1157 = vmatpush1.msra.mxu0 %v1137
      %1158 = vmatprep.subr.mxu0 0.0
      %1159 = vmatpush1.msra.mxu0 %v1138
      %1160 = vmatprep.subr.mxu0 0.0
      %1161 = vmatpush1.msra.mxu0 %v1139
      %1162 = vmatprep.subr.mxu0 0.0
      %1163 = vmatpush1.msra.mxu0 %v1140
      %1164 = vmatprep.subr.mxu0 0.0
      %1165 = vmatpush1.msra.mxu0 %v1141
      %1166 = vmatprep.subr.mxu0 0.0
      %1167 = vmatpush1.msra.mxu0 %v1142
      %1168 = vmatprep.subr.mxu0 0.0
      %1169 = vmatpush1.msra.mxu0 %v1143
      %1170 = vmatprep.subr.mxu0 0.0
      %1171 = vmatpush1.msra.mxu0 %v1144
      %1172 = vmatprep.subr.mxu0 0.0
      %1173 = vmatpush1.msra.mxu0 0.0
      %1174 = vmatprep.subr.mxu0 0.0
      %1175 = vmatpush1.msra.mxu0 0.0
      %1176 = vmatprep.subr.mxu0 0.0
      %1177 = vmatpush1.msra.mxu0 0.0
      %1178 = vmatprep.subr.mxu0 0.0
      %1179 = vmatpush1.msra.mxu0 0.0
      %1180 = vmatprep.subr.mxu0 0.0
      %1181 = vmatpush1.msra.mxu0 0.0
      %1182 = vmatprep.subr.mxu0 0.0
      %1183 = vmatpush1.msra.mxu0 0.0
      %1184 = vmatprep.subr.mxu0 0.0
      %1185 = vmatpush1.msra.mxu0 0.0
      %1186 = vmatprep.subr.mxu0 0.0
      %1187 = vmatpush1.msra.mxu0 0.0
      %1188 = vmatprep.subr.mxu0 0.0
      %1189 = vmatpush1.msra.mxu0 0.0
      %1190 = vmatprep.subr.mxu0 0.0
      %1191 = vmatpush1.msra.mxu0 0.0
      %1192 = vmatprep.subr.mxu0 0.0
      %1193 = vmatpush1.msra.mxu0 0.0
      %1194 = vmatprep.subr.mxu0 0.0
      %1195 = vmatpush1.msra.mxu0 0.0
      %1196 = vmatprep.subr.mxu0 0.0
      %1197 = vmatpush1.msra.mxu0 0.0
      %1198 = vmatprep.subr.mxu0 0.0
      %1199 = vmatpush1.msra.mxu0 0.0
      %1200 = vmatprep.subr.mxu0 0.0
      %1201 = vmatpush1.msra.mxu0 0.0
      %1202 = vmatprep.subr.mxu0 0.0
      %1203 = vmatpush1.msra.mxu0 0.0
      %1204 = vmatprep.subr.mxu0 0.0
      %1205 = vmatpush1.msra.mxu0 0.0
      %1206 = vmatprep.subr.mxu0 0.0
      %1207 = vmatpush1.msra.mxu0 0.0
      %1208 = vmatprep.subr.mxu0 0.0
      %1209 = vmatpush1.msra.mxu0 0.0
      %1210 = vmatprep.subr.mxu0 0.0
      %1211 = vmatpush1.msra.mxu0 0.0
      %1212 = vmatprep.subr.mxu0 0.0
      %1213 = vmatpush1.msra.mxu0 0.0
      %1214 = vmatprep.subr.mxu0 0.0
      %1215 = vmatpush1.msra.mxu0 0.0
      %1216 = vmatprep.subr.mxu0 0.0
      %1217 = vmatpush1.msra.mxu0 0.0
      %1218 = vmatprep.subr.mxu0 0.0
      %1219 = vmatpush1.msra.mxu0 0.0
      %1220 = vmatprep.mubr.f32.mxu0 0.0
      %1221 = vmatmul.mubr.f32.gmra.mrb[0].mxu0 %v1154
      %v1222 = vpop.f32.mrb[0].mxu0
      %v1223 = vadd.f32 %v1150, %v1222
      %v1224 = vpop.f32.mrb[0].mxu0
      %1225 = vdwg.mxu0
      %v1226 = vadd.f32 %v1051, %v1223
      %v1227 = vld [vmem:[%s18] sm:$0x1]
      %v1228 = vld [vmem:[%s19] sm:$0x1]
      %v1229 = vsel %vm660, %v1226, 0.0
      %1230 = vadd.xlane.f32.xlu0 %v1229
      %v1231 = vpop.xlane.xlu0 %1230
      %v1232 = vmul.f32 %v1231, %v824
      %v1233 = vsub.f32 %v1226, %v1232
      %v1234 = vmul.f32 %v1233, %v1233
      %v1235 = vsel %vm660, %v1234, 0.0
      %1236 = vadd.xlane.f32.xlu0 %v1235
      %v1237 = vpop.xlane.xlu0 %1236
      %v1238 = vmul.f32 %v1237, %v824
      %v1239 = vadd.f32 %v1238, 1e-05
      %v1240 = vrsqrt.pop %v1239
      %v1241 = vmul.f32 %v1233, %v1240
      %v1243 = vlaneseq
      %v1244 = vshrl.u32 %v1243, 7
      %v1245 = vsub.s32 0, %v1244
      %v1246 = vrot.slane %v1227, %v1245
      %v1248 = vmul.f32 %v1241, %v1246
      %v1250 = vlaneseq
      %v1251 = vshrl.u32 %v1250, 7
      %v1252 = vsub.s32 0, %v1251
      %v1253 = vrot.slane %v1228, %v1252
      %v1255 = vadd.f32 %v1248, %v1253
      %1256 = vst.msk [vmem:[%s641] sm:$0xff] %vm660, %v1255
      %p1257 = scmp.lt.s32.totalorder %s31, 1
      %s1258 = scalar_select %p1257, %s31, 1
      %s1259 = smul.addr %s1258, 8
      %s1260 = scalar_lea.vmem %s20, %s1259
      // Predicated region
      $region101: #{transformer_forward.7} parent=99 // pred_check
        %p1261 = pneg %p479
      $region102: #{transformer_forward.7} parent=99 // pred_check_branch
        %1263 = sbr.rel (%p1261) target = $region104
      $region103: #{transformer_forward.7} parent=99 // pred_region
        _
      $region104: #{transformer_forward.7} parent=99 // pred_fallthru
        _
    $region100: #{transformer_forward.7} parent=5 // pred_fallthru
      _
    %p1264 = scmp.le.s32.totalorder 2, %s26
    // Predicated region
    $region105: #{transformer_forward.7} parent=5 // pred_check
      %p1265 = pneg %p1264
    $region106: #{transformer_forward.7} parent=5 // pred_check_branch
      %1267 = sbr.rel (%p1265) target = $region108
    $region107: #{transformer_forward.7} parent=5 // pred_region
      %s1268 = ssub.s32 %s26, 2
      // Predicated region
      $region109: #{transformer_forward.7} parent=107 // pred_check
        %p1269 = pneg %p485
      $region110: #{transformer_forward.7} parent=107 // pred_check_branch
        %1271 = sbr.rel (%p1269) target = $region112
      $region111: #{transformer_forward.7} parent=107 // pred_region
        %p1272 = scmp.lt.s32.totalorder %s32, 1
        %s1273 = scalar_select %p1272, %s32, 1
        %s1274 = smul.addr %s1273, 8
        %s1275 = scalar_lea.vmem %s20, %s1274
      $region112: #{transformer_forward.7} parent=107 // pred_fallthru
        _
    $region108: #{transformer_forward.7} parent=5 // pred_fallthru
      _
  $region6: #{transformer_forward.7} parent=0 // loop_footer
    %s30 = sadd.s32 1, %s26
  $region7: #{transformer_forward.7} parent=0 // loop_footer_branch
    %25 = sbr.rel target = $region3
  $region8: #{transformer_forward.7} parent=0 // loop_exit
    _

</llo_original>
